<compile_context>
chip_gen: v7x
topology: tpu7x:2x2x1
jax: 0.10.0
libtpu: 0.0.40
codegen_flags: <defaults>
</compile_context>

<pallas_src>
import math
import functools

import jax
import jax.numpy as jnp
from jax import lax
from jax.experimental import pallas as pl
from jax.experimental.pallas import tpu as pltpu

F32 = jnp.float32
BF16 = jnp.bfloat16


# ---------------------------------------------------------------------------
# hardware caps: VMEM budget + whether bf16 elementwise math is worthwhile
# ---------------------------------------------------------------------------
def _tpu_caps():
    kind = ""
    try:
        kind = jax.devices()[0].device_kind.lower()
    except Exception:
        pass
    # v5e has no bf16 VPU/EUP -> keep elementwise (GELU) in f32 there.
    bf16_elem = ("v6" in kind) or ("v7" in kind) or ("tpu7" in kind)

    vmem = None
    try:
        vmem = getattr(pltpu.get_tpu_info(), "vmem_capacity_bytes", None)
    except Exception:
        vmem = None

    if vmem:
        if vmem <= (80 << 20):                      # v7x-class: leave headroom
            budget = min(int(vmem * 0.75), 100 << 20)
        else:                                       # v5e / v6e (128 MiB)
            budget = min(int(vmem * 0.80), 100 << 20)
    elif ("v7" in kind) or ("tpu7" in kind):
        budget = 48 << 20
    elif ("v6" in kind) or ("v5 lite" in kind) or ("v5e" in kind) or ("v5lite" in kind):
        budget = 100 << 20
    else:
        budget = 32 << 20                           # conservative fallback
    return budget, bf16_elem


def _round_up(x, m):
    return ((x + m - 1) // m) * m


def _mono_vmem_est(c, cols, hid):
    """Rough per-grid-step VMEM footprint of the monolithic kernel (bytes)."""
    slab = c * cols * 4
    return 26 * slab + 6 * hid * cols + 4 * (3 * c * c + 2 * c * hid) + (2 << 20)


# ---------------------------------------------------------------------------
# in-kernel helpers
# ---------------------------------------------------------------------------
def _gelu_tanh(x):
    # tanh-approximation GELU (EUP friendly), |err| ~1e-3 vs exact erf GELU.
    c0 = 0.7978845608028654  # sqrt(2/pi)
    return 0.5 * x * (1.0 + jnp.tanh(c0 * (x + 0.044715 * x * x * x)))


def _layernorm_cols(x, eps=1e-5):
    """Channel LayerNorm of a (C, N) slab (normalize over axis 0).

    The two channel-axis reductions are done as an (8,C)@(C,N) MXU matmul so
    the sublane/XLU path stays free; row 0 of the result is the reduction.
    The affine (weight/bias) is folded into the following projection weights
    by the wrapper.
    """
    c = x.shape[0]
    ones = jnp.full((8, c), 1.0 / c, F32)
    mu = jnp.dot(ones, x, preferred_element_type=F32)[0:1, :]        # (1, N)
    d = x - mu
    var = jnp.dot(ones, d * d, preferred_element_type=F32)[0:1, :]   # (1, N)
    return d * lax.rsqrt(var + eps)


# ---------------------------------------------------------------------------
# monolithic kernel: one batch group per grid step
# ---------------------------------------------------------------------------
def _mono_kernel(group, hw_seg, needs_mask, bf16_elem, *refs):
    if group > 1:
        *refs, av_ref = refs
    if needs_mask:
        (img_ref, evt_ref, hwm_ref, wq, bq, wkv, bkv, wp, temp, hbias,
         fc1_w, fc1_b, fc2_w, fc2_b, out_ref) = refs
    else:
        (img_ref, evt_ref, wq, bq, wkv, bkv, wp, temp, hbias,
         fc1_w, fc1_b, fc2_w, fc2_b, out_ref) = refs

    img = img_ref[0]                       # (C, group*hw_seg) f32
    evt = evt_ref[0]
    c = wq.shape[0]

    # norm1_image / norm1_event (affine folded into wq / wkv)
    xi = _layernorm_cols(img).astype(BF16)
    xe = _layernorm_cols(evt).astype(BF16)

    # 1x1-conv projections; K & V share one stacked (2C,C) matmul.
    q = jnp.dot(wq[...], xi, preferred_element_type=F32) + bq[...]      # (C, G)
    kv = jnp.dot(wkv[...], xe, preferred_element_type=F32) + bkv[...]   # (2C, G)
    k = kv[:c, :]
    v_bf = kv[c:, :].astype(BF16)          # single bf16 cast of V

    hbias_v = hbias[...]                   # (C, C) additive block-diag head mask
    temp_v = temp[...]                     # (C, 1) per-head temperature (row-folded)
    if needs_mask:
        hw_mask = hwm_ref[...]             # (1, hw_seg): 1 in real HW columns

    # channel attention, one batch element at a time (static unrolled loop).
    # Full-C masked attention on purpose: HBM-bound kernel, so the structurally
    # zero cross-head entries are free; tiny per-head K would not be.
    for t in range(group):
        lo, hi = t * hw_seg, (t + 1) * hw_seg
        qt = q[:, lo:hi]
        kt = k[:, lo:hi]
        if needs_mask:                      # kill the bias leak in padded columns
            qt = qt * hw_mask
            kt = kt * hw_mask
        # F.normalize(dim=-1): x * rsqrt(max(sum(x^2), 1e-24)); temp folded in.
        qn = qt * (lax.rsqrt(jnp.maximum(jnp.sum(qt * qt, axis=1, keepdims=True),
                                         1e-24)) * temp_v)
        kn = kt * lax.rsqrt(jnp.maximum(jnp.sum(kt * kt, axis=1, keepdims=True),
                                        1e-24))
        logits = lax.dot_general(qn.astype(BF16), kn.astype(BF16),
                                 (((1,), (1,)), ((), ())),
                                 preferred_element_type=F32) + hbias_v   # (C, C) f32
        m = jnp.max(logits, axis=-1, keepdims=True)
        p = jnp.exp(logits - m)
        s = jnp.sum(p, axis=-1, keepdims=True)
        attn = (p * pl.reciprocal(s, approx=True)).astype(BF16)         # (C, C)
        piece = jnp.dot(attn, v_bf[:, lo:hi],
                        preferred_element_type=F32).astype(BF16)        # (C, hw_seg)
        if group > 1:
            av_ref[:, lo:hi] = piece
        else:
            attn_v = piece
    if group > 1:
        attn_v = av_ref[...]

    attn_out = jnp.dot(wp[...], attn_v, preferred_element_type=F32)     # (C, G)
    fused = img + attn_out                                              # residual 1

    # FFN branch: norm2 (affine folded into fc1) -> fc1 -> GELU -> fc2
    y = _layernorm_cols(fused).astype(BF16)
    hdn = jnp.dot(fc1_w[...], y, preferred_element_type=F32) + fc1_b[...]
    if bf16_elem:
        hdn = _gelu_tanh(hdn.astype(BF16))      # bf16 EUP/VPU (v6e/v7x)
    else:
        hdn = _gelu_tanh(hdn).astype(BF16)      # f32 elementwise (v5e)
    ffn = jnp.dot(fc2_w[...], hdn, preferred_element_type=F32) + fc2_b[...]

    out_ref[0] = fused + ffn


# ---------------------------------------------------------------------------
# two-phase HW-tiled kernels (large HW / small-VMEM chips)
# ---------------------------------------------------------------------------
def _phase1_kernel(needs_mask, *refs):
    if needs_mask:
        (img_ref, evt_ref, hwm_ref, wq, bq, wk, bk,
         raw_ref, qss_ref, kss_ref) = refs
    else:
        (img_ref, evt_ref, wq, bq, wk, bk,
         raw_ref, qss_ref, kss_ref) = refs

    @pl.when(pl.program_id(1) == 0)
    def _():
        raw_ref[...] = jnp.zeros(raw_ref.shape, raw_ref.dtype)
        qss_ref[...] = jnp.zeros(qss_ref.shape, qss_ref.dtype)
        kss_ref[...] = jnp.zeros(kss_ref.shape, kss_ref.dtype)

    xi = _layernorm_cols(img_ref[0]).astype(BF16)
    xe = _layernorm_cols(evt_ref[0]).astype(BF16)
    q = jnp.dot(wq[...], xi, preferred_element_type=F32) + bq[...]      # (C, thw)
    k = jnp.dot(wk[...], xe, preferred_element_type=F32) + bk[...]
    if needs_mask:
        hw_mask = hwm_ref[...]
        q = q * hw_mask
        k = k * hw_mask
    raw_ref[0] += lax.dot_general(q.astype(BF16), k.astype(BF16),
                                  (((1,), (1,)), ((), ())),
                                  preferred_element_type=F32)            # (C, C)
    qss_ref[0] += jnp.sum(q * q, axis=1, keepdims=True)
    kss_ref[0] += jnp.sum(k * k, axis=1, keepdims=True)


def _phase2_kernel(bf16_elem, img_ref, evt_ref, mwv_ref, mb_ref,
                   fc1_w, fc1_b, fc2_w, fc2_b, out_ref):
    img = img_ref[0]                                                     # (C, thw)
    xe = _layernorm_cols(evt_ref[0]).astype(BF16)
    # wp @ attn @ wv folded into one per-batch (C,C) matrix applied to xe.
    attn_out = jnp.dot(mwv_ref[0], xe, preferred_element_type=F32) + mb_ref[0]
    fused = img + attn_out
    y = _layernorm_cols(fused).astype(BF16)
    hdn = jnp.dot(fc1_w[...], y, preferred_element_type=F32) + fc1_b[...]
    if bf16_elem:
        hdn = _gelu_tanh(hdn.astype(BF16))
    else:
        hdn = _gelu_tanh(hdn).astype(BF16)
    ffn = jnp.dot(fc2_w[...], hdn, preferred_element_type=F32) + fc2_b[...]
    out_ref[0] = fused + ffn


# ---------------------------------------------------------------------------
# wrappers
# ---------------------------------------------------------------------------
def _fold_params(p):
    """Fold the LayerNorm affines into the following projections (exact)."""
    col = lambda a: a.reshape(-1, 1).astype(F32)
    return dict(
        wq=(p['wq'] * p['lni_w'][None, :]).astype(F32),
        bq=col(p['wq'] @ p['lni_b']),
        wk=(p['wk'] * p['lne_w'][None, :]).astype(F32),
        bk=col(p['wk'] @ p['lne_b']),
        wv=(p['wv'] * p['lne_w'][None, :]).astype(F32),
        bv=col(p['wv'] @ p['lne_b']),
        wp=p['wp'].astype(F32),
        fc1=(p['fc1_w'] * p['n2_w'][None, :]).astype(F32),
        fc1_b=col(p['fc1_b'] + p['fc1_w'] @ p['n2_b']),
        fc2=p['fc2_w'].astype(F32),
        fc2_b=col(p['fc2_b']),
    )


def _run_monolithic(image, event, f, head_bias, temp_c, b, c, hw, hwp, hid,
                    budget, bf16_elem, group_size):
    needs_mask = (hwp != hw)

    # small-HW batch grouping; keep >= 2 grid steps so both v7x TCs get work.
    if group_size is None:
        group = 1
        for g in range(1, b + 1):
            if b % g:
                continue
            if b >= 2 and (b // g) < 2:
                break
            if _mono_vmem_est(c, g * hwp, hid) > budget:
                break
            group = g
            if g * c * hwp * 4 >= (1 << 20):     # per-step slab streams well already
                break
    else:
        group = int(group_size)
        assert b % group == 0, "group_size must divide the batch"
    ng = b // group
    G = group * hwp

    img3 = image.reshape(b, c, hw).astype(F32)
    evt3 = event.reshape(b, c, hw).astype(F32)
    if needs_mask:
        pad = hwp - hw
        img3 = jnp.pad(img3, ((0, 0), (0, 0), (0, pad)))
        evt3 = jnp.pad(evt3, ((0, 0), (0, 0), (0, pad)))
    if group > 1:
        regroup = lambda a: a.reshape(ng, group, c, hwp).transpose(0, 2, 1, 3) \
                             .reshape(ng, c, G)
        img3 = regroup(img3)
        evt3 = regroup(evt3)

    bfc = lambda a: a.astype(BF16)
    wkv = jnp.concatenate([f['wk'], f['wv']], axis=0)          # (2C, C)
    bkv = jnp.concatenate([f['bk'], f['bv']], axis=0)          # (2C, 1)

    operands = [img3, evt3]
    if needs_mask:
        hw_mask = (jnp.arange(hwp) < hw).astype(F32).reshape(1, hwp)
        operands.append(hw_mask)
    operands += [bfc(f['wq']), f['bq'], bfc(wkv), bkv, bfc(f['wp']),
                 temp_c, head_bias,
                 bfc(f['fc1']), f['fc1_b'], bfc(f['fc2']), f['fc2_b']]

    batched = pl.BlockSpec((1, c, G), lambda i: (i, 0, 0))

    def full(shape):
        return pl.BlockSpec(shape, lambda i, _n=len(shape): (0,) * _n)

    in_specs = [batched, batched] + [full(op.shape) for op in operands[2:]]
    scratch = [pltpu.VMEM((c, G), BF16)] if group > 1 else []

    outg = pl.pallas_call(
        functools.partial(_mono_kernel, group, hwp, needs_mask, bf16_elem),
        out_shape=jax.ShapeDtypeStruct((ng, c, G), F32),
        grid=(ng,),
        in_specs=in_specs,
        out_specs=batched,
        scratch_shapes=scratch,
        input_output_aliases={0: 0},       # image buffer reused for the output
        compiler_params=pltpu.CompilerParams(
            dimension_semantics=("parallel",),
            vmem_limit_bytes=int(budget)),
    )(*operands)

    if group > 1:
        outg = outg.reshape(ng, c, group, hwp).transpose(0, 2, 1, 3) \
                   .reshape(b, c, hwp)
    return outg[..., :hw] if needs_mask else outg


def _run_tiled(image, event, f, temp_c, b, c, ch, hw, hid, budget, bf16_elem,
               hw_tile):
    # HW tile: multiple of 128, as large as the VMEM budget allows.
    if hw_tile is None:
        cap = max(128, _round_up(hw, 128))
        thw = 128
        while (thw * 2 <= cap and thw < (16 << 10)
               and _mono_vmem_est(c, thw * 2, hid) <= budget):
            thw *= 2
    else:
        thw = int(hw_tile)
    assert thw % 128 == 0
    hwp = _round_up(hw, thw)
    nt = hwp // thw
    needs_mask = (hwp != hw)

    img3 = image.reshape(b, c, hw).astype(F32)
    evt3 = event.reshape(b, c, hw).astype(F32)
    if needs_mask:
        pad = hwp - hw
        img3 = jnp.pad(img3, ((0, 0), (0, 0), (0, pad)))
        evt3 = jnp.pad(evt3, ((0, 0), (0, 0), (0, pad)))

    bfc = lambda a: a.astype(BF16)
    tile_io = pl.BlockSpec((1, c, thw), lambda i, t: (i, 0, t))

    def full2(shape):
        return pl.BlockSpec(shape, lambda i, t, _n=len(shape): (0,) * _n)

    # ---- phase 1: accumulate raw q@k^T and per-row sum-of-squares ----------
    p1_operands = [img3, evt3]
    p1_in = [tile_io, tile_io]
    if needs_mask:
        hw_mask = (jnp.arange(hwp) < hw).astype(F32).reshape(1, hwp)
        p1_operands.append(hw_mask)
        p1_in.append(pl.BlockSpec((1, thw), lambda i, t: (0, t)))
    p1_operands += [bfc(f['wq']), f['bq'], bfc(f['wk']), f['bk']]
    p1_in += [full2(op.shape) for op in p1_operands[len(p1_in):]]

    raw, qss, kss = pl.pallas_call(
        functools.partial(_phase1_kernel, needs_mask),
        out_shape=(jax.ShapeDtypeStruct((b, c, c), F32),
                   jax.ShapeDtypeStruct((b, c, 1), F32),
                   jax.ShapeDtypeStruct((b, c, 1), F32)),
        grid=(b, nt),
        in_specs=p1_in,
        out_specs=(pl.BlockSpec((1, c, c), lambda i, t: (i, 0, 0)),
                   pl.BlockSpec((1, c, 1), lambda i, t: (i, 0, 0)),
                   pl.BlockSpec((1, c, 1), lambda i, t: (i, 0, 0))),
        compiler_params=pltpu.CompilerParams(
            dimension_semantics=("parallel", "arbitrary"),
            vmem_limit_bytes=int(budget)),
    )(*p1_operands)

    # ---- between phases: exact rescale + softmax + fold (tiny (C,C) work) --
    inv_q = lax.rsqrt(jnp.maximum(qss, 1e-24))                 # (B, C, 1)
    inv_k = lax.rsqrt(jnp.maximum(kss, 1e-24))
    logits = raw * inv_q * jnp.swapaxes(inv_k, 1, 2) * temp_c[None, :, :]
    row_h = jnp.arange(c)[:, None] // ch
    col_h = jnp.arange(c)[None, :] // ch
    logits = jnp.where((row_h == col_h)[None], logits, -1e30)  # f32 only
    attn = jax.nn.softmax(logits, axis=-1)                     # (B, C, C)
    m = jnp.einsum('oi,bij->boj', f['wp'], attn)               # wp @ attn
    mwv = jnp.einsum('bij,jk->bik', m, f['wv']).astype(BF16)   # (B, C, C)
    mb = jnp.einsum('bij,jk->bik', m, f['bv'])                 # (B, C, 1)

    # ---- phase 2: stream tiles -> attn_out + residual + FFN ----------------
    p2_operands = [img3, evt3, mwv, mb,
                   bfc(f['fc1']), f['fc1_b'], bfc(f['fc2']), f['fc2_b']]
    p2_in = [tile_io, tile_io,
             pl.BlockSpec((1, c, c), lambda i, t: (i, 0, 0)),
             pl.BlockSpec((1, c, 1), lambda i, t: (i, 0, 0)),
             full2(f['fc1'].shape), full2(f['fc1_b'].shape),
             full2(f['fc2'].shape), full2(f['fc2_b'].shape)]

    outp = pl.pallas_call(
        functools.partial(_phase2_kernel, bf16_elem),
        out_shape=jax.ShapeDtypeStruct((b, c, hwp), F32),
        grid=(b, nt),
        in_specs=p2_in,
        out_specs=tile_io,
        input_output_aliases={0: 0},
        compiler_params=pltpu.CompilerParams(
            dimension_semantics=("parallel", "parallel"),
            vmem_limit_bytes=int(budget)),
    )(*p2_operands)

    return outp[..., :hw] if needs_mask else outp


def event_image_block(image, event, p, *, group_size=None, force_tiled=False,
                      hw_tile=None):
    """image/event: (B, C, H, W) float32.  Returns (B, C, H, W) float32."""
    b, c, h, w = image.shape
    hw = h * w
    nh = int(p['num_heads'])
    ch = c // nh
    hid = p['fc1_w'].shape[0]

    budget, bf16_elem = _tpu_caps()
    f = _fold_params(p)
    temp_c = jnp.repeat(p['temp'].astype(F32), ch).reshape(c, 1)   # (C, 1)

    hwp = _round_up(hw, 128)          # lane-dense output stores
    use_tiled = force_tiled or (_mono_vmem_est(c, hwp, hid) > budget)

    if use_tiled:
        out3 = _run_tiled(image, event, f, temp_c, b, c, ch, hw, hid,
                          budget, bf16_elem, hw_tile)
    else:
        row_h = jnp.arange(c)[:, None] // ch
        col_h = jnp.arange(c)[None, :] // ch
        head_bias = jnp.where(row_h == col_h, 0.0, -1e30).astype(F32)
        out3 = _run_monolithic(image, event, f, head_bias, temp_c,
                               b, c, hw, hwp, hid, budget, bf16_elem,
                               group_size)
    return out3.reshape(b, c, h, w)


# ---------------------------------------------------------------------------
# Pure-JAX reference (mirrors the PyTorch forward)
# ---------------------------------------------------------------------------
def reference_forward(image, event, p):
    b, c, h, w = image.shape
    hw = h * w
    nh = int(p['num_heads'])
    ch = c // nh

    def ln_c(x, wgt, bias, eps=1e-5):   # x: (b, c, hw), normalize over c
        mu = x.mean(axis=1, keepdims=True)
        var = ((x - mu) ** 2).mean(axis=1, keepdims=True)
        return (x - mu) / jnp.sqrt(var + eps) * wgt[None, :, None] + bias[None, :, None]

    img = image.reshape(b, c, hw)
    evt = event.reshape(b, c, hw)
    xi = ln_c(img, p['lni_w'], p['lni_b'])
    xe = ln_c(evt, p['lne_w'], p['lne_b'])

    q = jnp.einsum('oc,bcp->bop', p['wq'], xi).reshape(b, nh, ch, hw)
    k = jnp.einsum('oc,bcp->bop', p['wk'], xe).reshape(b, nh, ch, hw)
    v = jnp.einsum('oc,bcp->bop', p['wv'], xe).reshape(b, nh, ch, hw)
    q = q / jnp.maximum(jnp.sqrt(jnp.sum(q * q, axis=-1, keepdims=True)), 1e-12)
    k = k / jnp.maximum(jnp.sqrt(jnp.sum(k * k, axis=-1, keepdims=True)), 1e-12)
    attn = jnp.einsum('bhip,bhjp->bhij', q, k) * p['temp'][None, :, None, None]
    attn = jax.nn.softmax(attn, axis=-1)
    out = jnp.einsum('bhij,bhjp->bhip', attn, v).reshape(b, c, hw)
    out = jnp.einsum('oc,bcp->bop', p['wp'], out)

    fused = img + out
    y = ln_c(fused, p['n2_w'], p['n2_b'])
    hdn = jnp.einsum('hc,bcp->bhp', p['fc1_w'], y) + p['fc1_b'][None, :, None]
    hdn = jax.nn.gelu(hdn, approximate=False)      # exact erf GELU (torch default)
    ffn = jnp.einsum('ch,bhp->bcp', p['fc2_w'], hdn) + p['fc2_b'][None, :, None]
    return (fused + ffn).reshape(b, c, h, w)


if __name__ == "__main__":
    def make_params(key, c, nh, hid):
        ks = jax.random.split(key, 16)
        return {
            'num_heads': nh,
            'lni_w': 1.0 + 0.1 * jax.random.normal(ks[0], (c,), F32),
            'lni_b': 0.1 * jax.random.normal(ks[1], (c,), F32),
            'lne_w': 1.0 + 0.1 * jax.random.normal(ks[2], (c,), F32),
            'lne_b': 0.1 * jax.random.normal(ks[3], (c,), F32),
            'wq': jax.random.normal(ks[4], (c, c), F32) / math.sqrt(c),
            'wk': jax.random.normal(ks[5], (c, c), F32) / math.sqrt(c),
            'wv': jax.random.normal(ks[6], (c, c), F32) / math.sqrt(c),
            'wp': jax.random.normal(ks[7], (c, c), F32) / math.sqrt(c),
            'temp': 1.0 + 0.1 * jax.random.normal(ks[8], (nh,), F32),
            'n2_w': 1.0 + 0.1 * jax.random.normal(ks[9], (c,), F32),
            'n2_b': 0.1 * jax.random.normal(ks[10], (c,), F32),
            'fc1_w': jax.random.normal(ks[11], (hid, c), F32) / math.sqrt(c),
            'fc1_b': 0.1 * jax.random.normal(ks[12], (hid,), F32),
            'fc2_w': jax.random.normal(ks[13], (c, hid), F32) / math.sqrt(hid),
            'fc2_b': 0.1 * jax.random.normal(ks[14], (c,), F32),
        }

    def check(name, out, ref):
        assert out.shape == ref.shape
        assert bool(jnp.all(jnp.isfinite(out))), f"{name}: non-finite output"
        err = jnp.abs(out - ref)
        tol = 5e-2 + 5e-2 * jnp.abs(ref)   # bf16 matmuls + tanh GELU
        assert bool(jnp.all(err <= tol)), \
            f"{name}: mismatch vs reference, max abs err {float(jnp.max(err))}"

    key = jax.random.PRNGKey(0)
    k_img, k_evt, k_par = jax.random.split(key, 3)

    C, NH, HID = 32, 4, 64
    params = make_params(k_par, C, NH, HID)

    # A: monolithic path, lane-aligned HW, default heuristics.
    img_a = jax.random.normal(k_img, (2, C, 16, 16), F32)
    evt_a = jax.random.normal(k_evt, (2, C, 16, 16), F32)
    out_a = jax.block_until_ready(event_image_block(img_a, evt_a, params))
    check("monolithic", out_a, reference_forward(img_a, evt_a, params))

    # B: monolithic path + batch grouping + HW padding (12*12 -> 256 lanes).
    img_b = jax.random.normal(jax.random.fold_in(k_img, 1), (4, C, 12, 12), F32)
    evt_b = jax.random.normal(jax.random.fold_in(k_evt, 1), (4, C, 12, 12), F32)
    ref_b = reference_forward(img_b, evt_b, params)
    out_b = jax.block_until_ready(
        event_image_block(img_b, evt_b, params, group_size=2))
    check("grouped+padded", out_b, ref_b)

    # C: forced two-phase HW-tiled path (the large-HW / v7x route).
    out_c = jax.block_until_ready(
        event_image_block(img_b, evt_b, params, force_tiled=True, hw_tile=128))
    check("tiled", out_c, ref_b)

    print("KERNEL_OK")
</pallas_src>

<mosaic_0001>
module attributes {stable_mosaic.version = 11 : i64} {
  func.func @_mono_kernel(%arg0: i32, %arg1: memref<1x32x256xf32, #tpu.memory_space<vmem>>, %arg2: memref<1x32x256xf32, #tpu.memory_space<vmem>>, %arg3: memref<32x32xbf16, #tpu.memory_space<vmem>>, %arg4: memref<32x1xf32, #tpu.memory_space<vmem>>, %arg5: memref<64x32xbf16, #tpu.memory_space<vmem>>, %arg6: memref<64x1xf32, #tpu.memory_space<vmem>>, %arg7: memref<32x32xbf16, #tpu.memory_space<vmem>>, %arg8: memref<32x1xf32, #tpu.memory_space<vmem>>, %arg9: memref<32x32xf32, #tpu.memory_space<vmem>>, %arg10: memref<64x32xbf16, #tpu.memory_space<vmem>>, %arg11: memref<64x1xf32, #tpu.memory_space<vmem>>, %arg12: memref<32x64xbf16, #tpu.memory_space<vmem>>, %arg13: memref<32x1xf32, #tpu.memory_space<vmem>>, %arg14: memref<1x32x256xf32, #tpu.memory_space<vmem>>) attributes {dimension_semantics = [#tpu.dimension_semantics<parallel>], iteration_bounds = array<i64: 2>, scalar_prefetch = 0 : i64, scratch_operands = 0 : i64, tpu.core_type = #tpu.core_type<tc>, window_params = [{transform_indices = @transform_0, window_bounds = array<i64: 1, 32, 256>}, {transform_indices = @transform_1, window_bounds = array<i64: 1, 32, 256>}, {pipeline_mode = #tpu.pipeline_mode<synchronous>, transform_indices = @transform_2, window_bounds = array<i64: 32, 32>}, {pipeline_mode = #tpu.pipeline_mode<synchronous>, transform_indices = @transform_3, window_bounds = array<i64: 32, 1>}, {pipeline_mode = #tpu.pipeline_mode<synchronous>, transform_indices = @transform_4, window_bounds = array<i64: 64, 32>}, {pipeline_mode = #tpu.pipeline_mode<synchronous>, transform_indices = @transform_5, window_bounds = array<i64: 64, 1>}, {pipeline_mode = #tpu.pipeline_mode<synchronous>, transform_indices = @transform_6, window_bounds = array<i64: 32, 32>}, {pipeline_mode = #tpu.pipeline_mode<synchronous>, transform_indices = @transform_7, window_bounds = array<i64: 32, 1>}, {pipeline_mode = #tpu.pipeline_mode<synchronous>, transform_indices = @transform_8, window_bounds = array<i64: 32, 32>}, {pipeline_mode = #tpu.pipeline_mode<synchronous>, transform_indices = @transform_9, window_bounds = array<i64: 64, 32>}, {pipeline_mode = #tpu.pipeline_mode<synchronous>, transform_indices = @transform_10, window_bounds = array<i64: 64, 1>}, {pipeline_mode = #tpu.pipeline_mode<synchronous>, transform_indices = @transform_11, window_bounds = array<i64: 32, 64>}, {pipeline_mode = #tpu.pipeline_mode<synchronous>, transform_indices = @transform_12, window_bounds = array<i64: 32, 1>}, {transform_indices = @transform_13, window_bounds = array<i64: 1, 32, 256>}]} {
    %c0 = arith.constant 0 : index
    %c0_0 = arith.constant 0 : index
    %c0_1 = arith.constant 0 : index
    %0 = vector.load %arg1[%c0, %c0_0, %c0_1] : memref<1x32x256xf32, #tpu.memory_space<vmem>>, vector<1x32x256xf32>
    %1 = vector.shape_cast %0 : vector<1x32x256xf32> to vector<32x256xf32>
    %c0_2 = arith.constant 0 : index
    %c0_3 = arith.constant 0 : index
    %c0_4 = arith.constant 0 : index
    %2 = vector.load %arg2[%c0_2, %c0_3, %c0_4] : memref<1x32x256xf32, #tpu.memory_space<vmem>>, vector<1x32x256xf32>
    %3 = vector.shape_cast %2 : vector<1x32x256xf32> to vector<32x256xf32>
    %cst = arith.constant 3.125000e-02 : f32
    %4 = vector.broadcast %cst : f32 to vector<8x32xf32>
    %cst_5 = arith.constant dense<0.000000e+00> : vector<8x256xf32>
    %5 = tpu.matmul %4, %1, %cst_5 {dimension_numbers = #tpu.dot_dimension_numbers<[1], [0], [0], [1], [0, 0, 1, 1], [], []>} : vector<8x32xf32>, vector<32x256xf32>, vector<8x256xf32> -> vector<8x256xf32>
    %6 = vector.extract_strided_slice %5 {offsets = [0, 0], sizes = [1, 256], strides = [1, 1]} : vector<8x256xf32> to vector<1x256xf32>
    %7 = vector.broadcast %6 : vector<1x256xf32> to vector<32x256xf32>
    %8 = arith.subf %1, %7 : vector<32x256xf32>
    %9 = arith.mulf %8, %8 : vector<32x256xf32>
    %cst_6 = arith.constant dense<0.000000e+00> : vector<8x256xf32>
    %10 = tpu.matmul %4, %9, %cst_6 {dimension_numbers = #tpu.dot_dimension_numbers<[1], [0], [0], [1], [0, 0, 1, 1], [], []>} : vector<8x32xf32>, vector<32x256xf32>, vector<8x256xf32> -> vector<8x256xf32>
    %11 = vector.extract_strided_slice %10 {offsets = [0, 0], sizes = [1, 256], strides = [1, 1]} : vector<8x256xf32> to vector<1x256xf32>
    %cst_7 = arith.constant 9.99999974E-6 : f32
    %12 = vector.broadcast %cst_7 : f32 to vector<1x256xf32>
    %13 = arith.addf %11, %12 : vector<1x256xf32>
    %14 = math.rsqrt %13 : vector<1x256xf32>
    %15 = vector.broadcast %14 : vector<1x256xf32> to vector<32x256xf32>
    %16 = arith.mulf %8, %15 : vector<32x256xf32>
    %17 = arith.truncf %16 : vector<32x256xf32> to vector<32x256xbf16>
    %cst_8 = arith.constant 3.125000e-02 : f32
    %18 = vector.broadcast %cst_8 : f32 to vector<8x32xf32>
    %cst_9 = arith.constant dense<0.000000e+00> : vector<8x256xf32>
    %19 = tpu.matmul %18, %3, %cst_9 {dimension_numbers = #tpu.dot_dimension_numbers<[1], [0], [0], [1], [0, 0, 1, 1], [], []>} : vector<8x32xf32>, vector<32x256xf32>, vector<8x256xf32> -> vector<8x256xf32>
    %20 = vector.extract_strided_slice %19 {offsets = [0, 0], sizes = [1, 256], strides = [1, 1]} : vector<8x256xf32> to vector<1x256xf32>
    %21 = vector.broadcast %20 : vector<1x256xf32> to vector<32x256xf32>
    %22 = arith.subf %3, %21 : vector<32x256xf32>
    %23 = arith.mulf %22, %22 : vector<32x256xf32>
    %cst_10 = arith.constant dense<0.000000e+00> : vector<8x256xf32>
    %24 = tpu.matmul %18, %23, %cst_10 {dimension_numbers = #tpu.dot_dimension_numbers<[1], [0], [0], [1], [0, 0, 1, 1], [], []>} : vector<8x32xf32>, vector<32x256xf32>, vector<8x256xf32> -> vector<8x256xf32>
    %25 = vector.extract_strided_slice %24 {offsets = [0, 0], sizes = [1, 256], strides = [1, 1]} : vector<8x256xf32> to vector<1x256xf32>
    %cst_11 = arith.constant 9.99999974E-6 : f32
    %26 = vector.broadcast %cst_11 : f32 to vector<1x256xf32>
    %27 = arith.addf %25, %26 : vector<1x256xf32>
    %28 = math.rsqrt %27 : vector<1x256xf32>
    %29 = vector.broadcast %28 : vector<1x256xf32> to vector<32x256xf32>
    %30 = arith.mulf %22, %29 : vector<32x256xf32>
    %31 = arith.truncf %30 : vector<32x256xf32> to vector<32x256xbf16>
    %c0_12 = arith.constant 0 : index
    %c0_13 = arith.constant 0 : index
    %32 = vector.load %arg3[%c0_12, %c0_13] : memref<32x32xbf16, #tpu.memory_space<vmem>>, vector<32x32xbf16>
    %cst_14 = arith.constant dense<0.000000e+00> : vector<32x256xf32>
    %33 = tpu.matmul %32, %17, %cst_14 {dimension_numbers = #tpu.dot_dimension_numbers<[1], [0], [0], [1], [0, 0, 1, 1], [], []>} : vector<32x32xbf16>, vector<32x256xbf16>, vector<32x256xf32> -> vector<32x256xf32>
    %c0_15 = arith.constant 0 : index
    %c0_16 = arith.constant 0 : index
    %34 = vector.load %arg4[%c0_15, %c0_16] : memref<32x1xf32, #tpu.memory_space<vmem>>, vector<32x1xf32>
    %35 = vector.broadcast %34 : vector<32x1xf32> to vector<32x256xf32>
    %36 = arith.addf %33, %35 : vector<32x256xf32>
    %c0_17 = arith.constant 0 : index
    %c0_18 = arith.constant 0 : index
    %37 = vector.load %arg5[%c0_17, %c0_18] : memref<64x32xbf16, #tpu.memory_space<vmem>>, vector<64x32xbf16>
    %cst_19 = arith.constant dense<0.000000e+00> : vector<64x256xf32>
    %38 = tpu.matmul %37, %31, %cst_19 {dimension_numbers = #tpu.dot_dimension_numbers<[1], [0], [0], [1], [0, 0, 1, 1], [], []>} : vector<64x32xbf16>, vector<32x256xbf16>, vector<64x256xf32> -> vector<64x256xf32>
    %c0_20 = arith.constant 0 : index
    %c0_21 = arith.constant 0 : index
    %39 = vector.load %arg6[%c0_20, %c0_21] : memref<64x1xf32, #tpu.memory_space<vmem>>, vector<64x1xf32>
    %40 = vector.broadcast %39 : vector<64x1xf32> to vector<64x256xf32>
    %41 = arith.addf %38, %40 : vector<64x256xf32>
    %42 = vector.extract_strided_slice %41 {offsets = [0, 0], sizes = [32, 256], strides = [1, 1]} : vector<64x256xf32> to vector<32x256xf32>
    %43 = vector.extract_strided_slice %41 {offsets = [32, 0], sizes = [32, 256], strides = [1, 1]} : vector<64x256xf32> to vector<32x256xf32>
    %44 = arith.truncf %43 : vector<32x256xf32> to vector<32x256xbf16>
    %c0_22 = arith.constant 0 : index
    %c0_23 = arith.constant 0 : index
    %45 = vector.load %arg9[%c0_22, %c0_23] : memref<32x32xf32, #tpu.memory_space<vmem>>, vector<32x32xf32>
    %c0_24 = arith.constant 0 : index
    %c0_25 = arith.constant 0 : index
    %46 = vector.load %arg8[%c0_24, %c0_25] : memref<32x1xf32, #tpu.memory_space<vmem>>, vector<32x1xf32>
    %47 = arith.mulf %36, %36 : vector<32x256xf32>
    %cst_26 = arith.constant dense<0.000000e+00> : vector<32xf32>
    %48 = vector.multi_reduction <add>, %47, %cst_26 [1] : vector<32x256xf32> to vector<32xf32>
    %49 = vector.shape_cast %48 : vector<32xf32> to vector<32x1xf32>
    %cst_27 = arith.constant 1.000000e-24 : f32
    %50 = vector.broadcast %cst_27 : f32 to vector<32x1xf32>
    %51 = arith.maximumf %49, %50 : vector<32x1xf32>
    %52 = math.rsqrt %51 : vector<32x1xf32>
    %53 = arith.mulf %52, %46 : vector<32x1xf32>
    %54 = vector.broadcast %53 : vector<32x1xf32> to vector<32x256xf32>
    %55 = arith.mulf %36, %54 : vector<32x256xf32>
    %56 = arith.mulf %42, %42 : vector<32x256xf32>
    %cst_28 = arith.constant dense<0.000000e+00> : vector<32xf32>
    %57 = vector.multi_reduction <add>, %56, %cst_28 [1] : vector<32x256xf32> to vector<32xf32>
    %58 = vector.shape_cast %57 : vector<32xf32> to vector<32x1xf32>
    %cst_29 = arith.constant 1.000000e-24 : f32
    %59 = vector.broadcast %cst_29 : f32 to vector<32x1xf32>
    %60 = arith.maximumf %58, %59 : vector<32x1xf32>
    %61 = math.rsqrt %60 : vector<32x1xf32>
    %62 = vector.broadcast %61 : vector<32x1xf32> to vector<32x256xf32>
    %63 = arith.mulf %42, %62 : vector<32x256xf32>
    %64 = arith.truncf %55 : vector<32x256xf32> to vector<32x256xbf16>
    %65 = arith.truncf %63 : vector<32x256xf32> to vector<32x256xbf16>
    %cst_30 = arith.constant dense<0.000000e+00> : vector<32x32xf32>
    %66 = tpu.matmul %64, %65, %cst_30 {dimension_numbers = #tpu.dot_dimension_numbers<[1], [1], [0], [0], [0, 0, 1, 0], [], []>} : vector<32x256xbf16>, vector<32x256xbf16>, vector<32x32xf32> -> vector<32x32xf32>
    %67 = arith.addf %66, %45 : vector<32x32xf32>
    %cst_31 = arith.constant dense<0xFF800000> : vector<32xf32>
    %68 = vector.multi_reduction <maximumf>, %67, %cst_31 [1] : vector<32x32xf32> to vector<32xf32>
    %69 = vector.shape_cast %68 : vector<32xf32> to vector<32x1xf32>
    %70 = vector.broadcast %69 : vector<32x1xf32> to vector<32x32xf32>
    %71 = arith.subf %67, %70 : vector<32x32xf32>
    %72 = math.exp %71 : vector<32x32xf32>
    %cst_32 = arith.constant dense<0.000000e+00> : vector<32xf32>
    %73 = vector.multi_reduction <add>, %72, %cst_32 [1] : vector<32x32xf32> to vector<32xf32>
    %74 = vector.shape_cast %73 : vector<32xf32> to vector<32x1xf32>
    %75 = tpu.reciprocal %74 {approx = true} : vector<32x1xf32> -> vector<32x1xf32>
    %76 = vector.broadcast %75 : vector<32x1xf32> to vector<32x32xf32>
    %77 = arith.mulf %72, %76 : vector<32x32xf32>
    %78 = arith.truncf %77 : vector<32x32xf32> to vector<32x32xbf16>
    %cst_33 = arith.constant dense<0.000000e+00> : vector<32x256xf32>
    %79 = tpu.matmul %78, %44, %cst_33 {dimension_numbers = #tpu.dot_dimension_numbers<[1], [0], [0], [1], [0, 0, 1, 1], [], []>} : vector<32x32xbf16>, vector<32x256xbf16>, vector<32x256xf32> -> vector<32x256xf32>
    %80 = arith.truncf %79 : vector<32x256xf32> to vector<32x256xbf16>
    %c0_34 = arith.constant 0 : index
    %c0_35 = arith.constant 0 : index
    %81 = vector.load %arg7[%c0_34, %c0_35] : memref<32x32xbf16, #tpu.memory_space<vmem>>, vector<32x32xbf16>
    %cst_36 = arith.constant dense<0.000000e+00> : vector<32x256xf32>
    %82 = tpu.matmul %81, %80, %cst_36 {dimension_numbers = #tpu.dot_dimension_numbers<[1], [0], [0], [1], [0, 0, 1, 1], [], []>} : vector<32x32xbf16>, vector<32x256xbf16>, vector<32x256xf32> -> vector<32x256xf32>
    %83 = arith.addf %1, %82 : vector<32x256xf32>
    %cst_37 = arith.constant 3.125000e-02 : f32
    %84 = vector.broadcast %cst_37 : f32 to vector<8x32xf32>
    %cst_38 = arith.constant dense<0.000000e+00> : vector<8x256xf32>
    %85 = tpu.matmul %84, %83, %cst_38 {dimension_numbers = #tpu.dot_dimension_numbers<[1], [0], [0], [1], [0, 0, 1, 1], [], []>} : vector<8x32xf32>, vector<32x256xf32>, vector<8x256xf32> -> vector<8x256xf32>
    %86 = vector.extract_strided_slice %85 {offsets = [0, 0], sizes = [1, 256], strides = [1, 1]} : vector<8x256xf32> to vector<1x256xf32>
    %87 = vector.broadcast %86 : vector<1x256xf32> to vector<32x256xf32>
    %88 = arith.subf %83, %87 : vector<32x256xf32>
    %89 = arith.mulf %88, %88 : vector<32x256xf32>
    %cst_39 = arith.constant dense<0.000000e+00> : vector<8x256xf32>
    %90 = tpu.matmul %84, %89, %cst_39 {dimension_numbers = #tpu.dot_dimension_numbers<[1], [0], [0], [1], [0, 0, 1, 1], [], []>} : vector<8x32xf32>, vector<32x256xf32>, vector<8x256xf32> -> vector<8x256xf32>
    %91 = vector.extract_strided_slice %90 {offsets = [0, 0], sizes = [1, 256], strides = [1, 1]} : vector<8x256xf32> to vector<1x256xf32>
    %cst_40 = arith.constant 9.99999974E-6 : f32
    %92 = vector.broadcast %cst_40 : f32 to vector<1x256xf32>
    %93 = arith.addf %91, %92 : vector<1x256xf32>
    %94 = math.rsqrt %93 : vector<1x256xf32>
    %95 = vector.broadcast %94 : vector<1x256xf32> to vector<32x256xf32>
    %96 = arith.mulf %88, %95 : vector<32x256xf32>
    %97 = arith.truncf %96 : vector<32x256xf32> to vector<32x256xbf16>
    %c0_41 = arith.constant 0 : index
    %c0_42 = arith.constant 0 : index
    %98 = vector.load %arg10[%c0_41, %c0_42] : memref<64x32xbf16, #tpu.memory_space<vmem>>, vector<64x32xbf16>
    %cst_43 = arith.constant dense<0.000000e+00> : vector<64x256xf32>
    %99 = tpu.matmul %98, %97, %cst_43 {dimension_numbers = #tpu.dot_dimension_numbers<[1], [0], [0], [1], [0, 0, 1, 1], [], []>} : vector<64x32xbf16>, vector<32x256xbf16>, vector<64x256xf32> -> vector<64x256xf32>
    %c0_44 = arith.constant 0 : index
    %c0_45 = arith.constant 0 : index
    %100 = vector.load %arg11[%c0_44, %c0_45] : memref<64x1xf32, #tpu.memory_space<vmem>>, vector<64x1xf32>
    %101 = vector.broadcast %100 : vector<64x1xf32> to vector<64x256xf32>
    %102 = arith.addf %99, %101 : vector<64x256xf32>
    %cst_46 = arith.constant 5.000000e-01 : f32
    %103 = vector.broadcast %cst_46 : f32 to vector<64x256xf32>
    %104 = arith.mulf %103, %102 : vector<64x256xf32>
    %cst_47 = arith.constant 4.471500e-02 : f32
    %105 = vector.broadcast %cst_47 : f32 to vector<64x256xf32>
    %106 = arith.mulf %105, %102 : vector<64x256xf32>
    %107 = arith.mulf %106, %102 : vector<64x256xf32>
    %108 = arith.mulf %107, %102 : vector<64x256xf32>
    %109 = arith.addf %102, %108 : vector<64x256xf32>
    %cst_48 = arith.constant 0.797884583 : f32
    %110 = vector.broadcast %cst_48 : f32 to vector<64x256xf32>
    %111 = arith.mulf %110, %109 : vector<64x256xf32>
    %112 = math.tanh %111 : vector<64x256xf32>
    %cst_49 = arith.constant 1.000000e+00 : f32
    %113 = vector.broadcast %cst_49 : f32 to vector<64x256xf32>
    %114 = arith.addf %113, %112 : vector<64x256xf32>
    %115 = arith.mulf %104, %114 : vector<64x256xf32>
    %116 = arith.truncf %115 : vector<64x256xf32> to vector<64x256xbf16>
    %c0_50 = arith.constant 0 : index
    %c0_51 = arith.constant 0 : index
    %117 = vector.load %arg12[%c0_50, %c0_51] : memref<32x64xbf16, #tpu.memory_space<vmem>>, vector<32x64xbf16>
    %cst_52 = arith.constant dense<0.000000e+00> : vector<32x256xf32>
    %118 = tpu.matmul %117, %116, %cst_52 {dimension_numbers = #tpu.dot_dimension_numbers<[1], [0], [0], [1], [0, 0, 1, 1], [], []>} : vector<32x64xbf16>, vector<64x256xbf16>, vector<32x256xf32> -> vector<32x256xf32>
    %c0_53 = arith.constant 0 : index
    %c0_54 = arith.constant 0 : index
    %119 = vector.load %arg13[%c0_53, %c0_54] : memref<32x1xf32, #tpu.memory_space<vmem>>, vector<32x1xf32>
    %120 = vector.broadcast %119 : vector<32x1xf32> to vector<32x256xf32>
    %121 = arith.addf %118, %120 : vector<32x256xf32>
    %122 = arith.addf %83, %121 : vector<32x256xf32>
    %c0_55 = arith.constant 0 : index
    %c0_56 = arith.constant 0 : index
    %c0_57 = arith.constant 0 : index
    %123 = vector.load %arg14[%c0_55, %c0_56, %c0_57] : memref<1x32x256xf32, #tpu.memory_space<vmem>>, vector<1x32x256xf32>
    %124 = vector.shape_cast %123 : vector<1x32x256xf32> to vector<32x256xf32>
    %125 = vector.shape_cast %122 : vector<32x256xf32> to vector<1x32x256xf32>
    tpu.vector_store %arg14[%c0_55, %c0_56, %c0_57], %125 {strides = array<i32>} : memref<1x32x256xf32, #tpu.memory_space<vmem>>, vector<1x32x256xf32>,
    return
  }
  func.func @transform_0(%arg0: i32) -> (i32, i32, i32) {
    %c0_i32 = arith.constant 0 : i32
    %c0_i32_0 = arith.constant 0 : i32
    %c0_i32_1 = arith.constant 0 : i32
    return %arg0, %c0_i32, %c0_i32_0 : i32, i32, i32
  }
  func.func @transform_1(%arg0: i32) -> (i32, i32, i32) {
    %c0_i32 = arith.constant 0 : i32
    %c0_i32_0 = arith.constant 0 : i32
    %c0_i32_1 = arith.constant 0 : i32
    return %arg0, %c0_i32, %c0_i32_0 : i32, i32, i32
  }
  func.func @transform_2(%arg0: i32) -> (i32, i32) {
    %c0_i32 = arith.constant 0 : i32
    %c0_i32_0 = arith.constant 0 : i32
    %c0_i32_1 = arith.constant 0 : i32
    return %c0_i32, %c0_i32_0 : i32, i32
  }
  func.func @transform_3(%arg0: i32) -> (i32, i32) {
    %c0_i32 = arith.constant 0 : i32
    %c0_i32_0 = arith.constant 0 : i32
    %c0_i32_1 = arith.constant 0 : i32
    return %c0_i32, %c0_i32_0 : i32, i32
  }
  func.func @transform_4(%arg0: i32) -> (i32, i32) {
    %c0_i32 = arith.constant 0 : i32
    %c0_i32_0 = arith.constant 0 : i32
    %c0_i32_1 = arith.constant 0 : i32
    return %c0_i32, %c0_i32_0 : i32, i32
  }
  func.func @transform_5(%arg0: i32) -> (i32, i32) {
    %c0_i32 = arith.constant 0 : i32
    %c0_i32_0 = arith.constant 0 : i32
    %c0_i32_1 = arith.constant 0 : i32
    return %c0_i32, %c0_i32_0 : i32, i32
  }
  func.func @transform_6(%arg0: i32) -> (i32, i32) {
    %c0_i32 = arith.constant 0 : i32
    %c0_i32_0 = arith.constant 0 : i32
    %c0_i32_1 = arith.constant 0 : i32
    return %c0_i32, %c0_i32_0 : i32, i32
  }
  func.func @transform_7(%arg0: i32) -> (i32, i32) {
    %c0_i32 = arith.constant 0 : i32
    %c0_i32_0 = arith.constant 0 : i32
    %c0_i32_1 = arith.constant 0 : i32
    return %c0_i32, %c0_i32_0 : i32, i32
  }
  func.func @transform_8(%arg0: i32) -> (i32, i32) {
    %c0_i32 = arith.constant 0 : i32
    %c0_i32_0 = arith.constant 0 : i32
    %c0_i32_1 = arith.constant 0 : i32
    return %c0_i32, %c0_i32_0 : i32, i32
  }
  func.func @transform_9(%arg0: i32) -> (i32, i32) {
    %c0_i32 = arith.constant 0 : i32
    %c0_i32_0 = arith.constant 0 : i32
    %c0_i32_1 = arith.constant 0 : i32
    return %c0_i32, %c0_i32_0 : i32, i32
  }
  func.func @transform_10(%arg0: i32) -> (i32, i32) {
    %c0_i32 = arith.constant 0 : i32
    %c0_i32_0 = arith.constant 0 : i32
    %c0_i32_1 = arith.constant 0 : i32
    return %c0_i32, %c0_i32_0 : i32, i32
  }
  func.func @transform_11(%arg0: i32) -> (i32, i32) {
    %c0_i32 = arith.constant 0 : i32
    %c0_i32_0 = arith.constant 0 : i32
    %c0_i32_1 = arith.constant 0 : i32
    return %c0_i32, %c0_i32_0 : i32, i32
  }
  func.func @transform_12(%arg0: i32) -> (i32, i32) {
    %c0_i32 = arith.constant 0 : i32
    %c0_i32_0 = arith.constant 0 : i32
    %c0_i32_1 = arith.constant 0 : i32
    return %c0_i32, %c0_i32_0 : i32, i32
  }
  func.func @transform_13(%arg0: i32) -> (i32, i32, i32) {
    %c0_i32 = arith.constant 0 : i32
    %c0_i32_0 = arith.constant 0 : i32
    %c0_i32_1 = arith.constant 0 : i32
    return %arg0, %c0_i32, %c0_i32_0 : i32, i32, i32
  }
}

</mosaic_0001>

<llo_original>
// kernel: tpu_custom_call.1
$region0: #{tpu_custom_call.1}
  #allocation0 [shape = 'u32[]', space=smem, size = 0x4, offset = 0x4, fixed_abs, tag = 'smem constant byte address 0x4 - core index']
  #allocation1 [shape = 'u32[144,128]{1,0:T(1,128)}', space=vmem, size = 0x12000, scoped, tag = 'internal scratch']
  %s0 = inlined_call_operand.hbm [shape: f32[2,32,256], index: 0, kind: input, shape index: {}, may-alias: {0,13}]
  %s1 = inlined_call_operand.vmem [shape: f32[2,32,256], index: 1, kind: input, shape index: {}]
  %s2 = inlined_call_operand.vmem [shape: bf16[32,32], index: 2, kind: input, shape index: {}]
  %s3 = inlined_call_operand.vmem [shape: f32[32,1], index: 3, kind: input, shape index: {}]
  %s4 = inlined_call_operand.vmem [shape: bf16[64,32], index: 4, kind: input, shape index: {}]
  %s5 = inlined_call_operand.vmem [shape: f32[64,1], index: 5, kind: input, shape index: {}]
  %s6 = inlined_call_operand.vmem [shape: bf16[32,32], index: 6, kind: input, shape index: {}]
  %s7 = inlined_call_operand.vmem [shape: f32[32,1], index: 7, kind: input, shape index: {}]
  %s8 = inlined_call_operand.vmem [shape: f32[32,32], index: 8, kind: input, shape index: {}]
  %s9 = inlined_call_operand.vmem [shape: bf16[64,32], index: 9, kind: input, shape index: {}]
  %s10 = inlined_call_operand.vmem [shape: f32[64,1], index: 10, kind: input, shape index: {}]
  %s11 = inlined_call_operand.vmem [shape: bf16[32,64], index: 11, kind: input, shape index: {}]
  %s12 = inlined_call_operand.vmem [shape: f32[32,1], index: 12, kind: input, shape index: {}]
  %s13 = inlined_call_operand.hbm [shape: f32[2,32,256], index: 13, kind: output, shape index: {}, may-alias: {0,13}]
  %s14 = sld [smem:[#allocation0]]
  $region89: #{tpu_custom_call.1} parent=0
    _
  %s16 = ssub.s32 1, %s14
  %s17 = scalar_select 0, %s16, %s14
  $region1: #{tpu_custom_call.1} parent=0
    #allocation2 [shape = 'u8[65536]{0}', space=vmem, size = 0x10000, scoped, tag = 'input window, operand 0']
    #allocation3 [shape = 's32[2]{0}', space=sflag, size = 0x8, scoped, tag = 'scoped memory for tpu_custom_call.1']
    #allocation4 [shape = 's32[2]{0}', space=sflag, size = 0x8, scoped, tag = 'scoped memory for tpu_custom_call.1']
    #allocation5 [shape = 'u8[65536]{0}', space=vmem, size = 0x10000, scoped, tag = 'output window, operand 0']
    %18 = vsyncpa [#allocation3], 0
    %s19 = scalar_lea.sflag [#allocation3], 1
    %20 = vsyncpa %s19, 0
    %21 = vsyncpa [#allocation4], 0
    %s22 = scalar_lea.sflag [#allocation4], 1
    %23 = vsyncpa %s22, 0
    loop: start=0, step=1, limit=4
    $region2: #{tpu_custom_call.1} parent=1 // loop_pre_header
      _
    $region3: #{tpu_custom_call.1} parent=1 // loop_header
      %s25 = sphi 0, %s29
      %p26 = scmp.ge.s32.totalorder %s25, 4
      %s35 = sphi 0, %s37
      %s38 = sphi 0, %s35
      %s39 = sphi 0, %s38
      %s55 = sphi 0, %s39
      %s61 = sphi 0, %s63
      %s64 = sphi 0, %s61
      %s65 = sphi 0, %s64
      %s81 = sphi 0, %s65
      %s85 = sphi 0, %s85
      %s87 = sphi 0, %s85
      %s88 = sphi 0, %s87
      %s102 = sphi 0, %s88
      %s106 = sphi 0, %s106
      %s108 = sphi 0, %s106
      %s109 = sphi 0, %s108
      %s123 = sphi 0, %s109
      %s127 = sphi 0, %s127
      %s129 = sphi 0, %s127
      %s130 = sphi 0, %s129
      %s144 = sphi 0, %s130
      %s148 = sphi 0, %s148
      %s150 = sphi 0, %s148
      %s151 = sphi 0, %s150
      %s165 = sphi 0, %s151
      %s169 = sphi 0, %s169
      %s171 = sphi 0, %s169
      %s172 = sphi 0, %s171
      %s186 = sphi 0, %s172
      %s190 = sphi 0, %s190
      %s192 = sphi 0, %s190
      %s193 = sphi 0, %s192
      %s207 = sphi 0, %s193
      %s211 = sphi 0, %s211
      %s213 = sphi 0, %s211
      %s214 = sphi 0, %s213
      %s228 = sphi 0, %s214
      %s232 = sphi 0, %s232
      %s234 = sphi 0, %s232
      %s235 = sphi 0, %s234
      %s249 = sphi 0, %s235
      %s253 = sphi 0, %s253
      %s255 = sphi 0, %s253
      %s256 = sphi 0, %s255
      %s270 = sphi 0, %s256
      %s274 = sphi 0, %s274
      %s276 = sphi 0, %s274
      %s277 = sphi 0, %s276
      %s291 = sphi 0, %s277
      %s295 = sphi 0, %s295
      %s297 = sphi 0, %s295
      %s298 = sphi 0, %s297
      %s312 = sphi 0, %s298
      %s318 = sphi 0, %s320
      %s321 = sphi 0, %s318
      %s322 = sphi 0, %s321
      %s338 = sphi 0, %s322
    $region4: #{tpu_custom_call.1} parent=1 // loop_header_branch
      %28 = sbr.rel (%p26) target = $region8
    $region5: #{tpu_custom_call.1} parent=1 // loop_body
      %s30 = ssub.s32 %s25, 1
      %s31 = ssub.s32 %s25, 2
      %s32 = sadd.s32 %s25, 1
      %s33 = ssub.s32 %s25, %s32
      %p34 = scmp.eq.s32.totalorder %s33, 0
      %s36 = sadd.s32 %s35, 1
      %s37 = scalar_select %p34, %s35, %s36
      %p40 = pneg %p34
      %p41 = scmp.eq.s32.totalorder %s25, 1
      %p42 = por %p40, %p41
      %p43 = scmp.ne.s32.totalorder %s35, %s38
      %p44 = scmp.eq.s32.totalorder %s25, 0
      %p45 = por %p43, %p44
      %p46 = scmp.ne.s32.totalorder %s35, %s38
      %p47 = scmp.eq.s32.totalorder %s30, 1
      %p48 = por %p46, %p47
      %p49 = scmp.ne.s32.totalorder %s38, %s39
      %p50 = scmp.eq.s32.totalorder %s30, 0
      %p51 = por %p49, %p50
      %p52 = scmp.ne.s32.totalorder %s38, %s39
      %p53 = scmp.eq.s32.totalorder %s31, 1
      %p54 = por %p52, %p53
      %p56 = scmp.ne.s32.totalorder %s39, %s55
      %p57 = scmp.eq.s32.totalorder %s31, 0
      %p58 = por %p56, %p57
      %s59 = ssub.s32 %s25, %s32
      %p60 = scmp.eq.s32.totalorder %s59, 0
      %s62 = sadd.s32 %s61, 1
      %s63 = scalar_select %p60, %s61, %s62
      %p66 = pneg %p60
      %p67 = scmp.eq.s32.totalorder %s25, 1
      %p68 = por %p66, %p67
      %p69 = scmp.ne.s32.totalorder %s61, %s64
      %p70 = scmp.eq.s32.totalorder %s25, 0
      %p71 = por %p69, %p70
      %p72 = scmp.ne.s32.totalorder %s61, %s64
      %p73 = scmp.eq.s32.totalorder %s30, 1
      %p74 = por %p72, %p73
      %p75 = scmp.ne.s32.totalorder %s64, %s65
      %p76 = scmp.eq.s32.totalorder %s30, 0
      %p77 = por %p75, %p76
      %p78 = scmp.ne.s32.totalorder %s64, %s65
      %p79 = scmp.eq.s32.totalorder %s31, 1
      %p80 = por %p78, %p79
      %p82 = scmp.ne.s32.totalorder %s65, %s81
      %p83 = scmp.eq.s32.totalorder %s31, 0
      %p84 = por %p82, %p83
      %s86 = sadd.s32 %s85, 1
      %p89 = scmp.eq.s32.totalorder %s25, 1
      %p90 = scmp.ne.s32.totalorder %s85, %s87
      %p91 = scmp.eq.s32.totalorder %s25, 0
      %p92 = por %p90, %p91
      %p93 = scmp.ne.s32.totalorder %s85, %s87
      %p94 = scmp.eq.s32.totalorder %s30, 1
      %p95 = por %p93, %p94
      %p96 = scmp.ne.s32.totalorder %s87, %s88
      %p97 = scmp.eq.s32.totalorder %s30, 0
      %p98 = por %p96, %p97
      %p99 = scmp.ne.s32.totalorder %s87, %s88
      %p100 = scmp.eq.s32.totalorder %s31, 1
      %p101 = por %p99, %p100
      %p103 = scmp.ne.s32.totalorder %s88, %s102
      %p104 = scmp.eq.s32.totalorder %s31, 0
      %p105 = por %p103, %p104
      %s107 = sadd.s32 %s106, 1
      %p110 = scmp.eq.s32.totalorder %s25, 1
      %p111 = scmp.ne.s32.totalorder %s106, %s108
      %p112 = scmp.eq.s32.totalorder %s25, 0
      %p113 = por %p111, %p112
      %p114 = scmp.ne.s32.totalorder %s106, %s108
      %p115 = scmp.eq.s32.totalorder %s30, 1
      %p116 = por %p114, %p115
      %p117 = scmp.ne.s32.totalorder %s108, %s109
      %p118 = scmp.eq.s32.totalorder %s30, 0
      %p119 = por %p117, %p118
      %p120 = scmp.ne.s32.totalorder %s108, %s109
      %p121 = scmp.eq.s32.totalorder %s31, 1
      %p122 = por %p120, %p121
      %p124 = scmp.ne.s32.totalorder %s109, %s123
      %p125 = scmp.eq.s32.totalorder %s31, 0
      %p126 = por %p124, %p125
      %s128 = sadd.s32 %s127, 1
      %p131 = scmp.eq.s32.totalorder %s25, 1
      %p132 = scmp.ne.s32.totalorder %s127, %s129
      %p133 = scmp.eq.s32.totalorder %s25, 0
      %p134 = por %p132, %p133
      %p135 = scmp.ne.s32.totalorder %s127, %s129
      %p136 = scmp.eq.s32.totalorder %s30, 1
      %p137 = por %p135, %p136
      %p138 = scmp.ne.s32.totalorder %s129, %s130
      %p139 = scmp.eq.s32.totalorder %s30, 0
      %p140 = por %p138, %p139
      %p141 = scmp.ne.s32.totalorder %s129, %s130
      %p142 = scmp.eq.s32.totalorder %s31, 1
      %p143 = por %p141, %p142
      %p145 = scmp.ne.s32.totalorder %s130, %s144
      %p146 = scmp.eq.s32.totalorder %s31, 0
      %p147 = por %p145, %p146
      %s149 = sadd.s32 %s148, 1
      %p152 = scmp.eq.s32.totalorder %s25, 1
      %p153 = scmp.ne.s32.totalorder %s148, %s150
      %p154 = scmp.eq.s32.totalorder %s25, 0
      %p155 = por %p153, %p154
      %p156 = scmp.ne.s32.totalorder %s148, %s150
      %p157 = scmp.eq.s32.totalorder %s30, 1
      %p158 = por %p156, %p157
      %p159 = scmp.ne.s32.totalorder %s150, %s151
      %p160 = scmp.eq.s32.totalorder %s30, 0
      %p161 = por %p159, %p160
      %p162 = scmp.ne.s32.totalorder %s150, %s151
      %p163 = scmp.eq.s32.totalorder %s31, 1
      %p164 = por %p162, %p163
      %p166 = scmp.ne.s32.totalorder %s151, %s165
      %p167 = scmp.eq.s32.totalorder %s31, 0
      %p168 = por %p166, %p167
      %s170 = sadd.s32 %s169, 1
      %p173 = scmp.eq.s32.totalorder %s25, 1
      %p174 = scmp.ne.s32.totalorder %s169, %s171
      %p175 = scmp.eq.s32.totalorder %s25, 0
      %p176 = por %p174, %p175
      %p177 = scmp.ne.s32.totalorder %s169, %s171
      %p178 = scmp.eq.s32.totalorder %s30, 1
      %p179 = por %p177, %p178
      %p180 = scmp.ne.s32.totalorder %s171, %s172
      %p181 = scmp.eq.s32.totalorder %s30, 0
      %p182 = por %p180, %p181
      %p183 = scmp.ne.s32.totalorder %s171, %s172
      %p184 = scmp.eq.s32.totalorder %s31, 1
      %p185 = por %p183, %p184
      %p187 = scmp.ne.s32.totalorder %s172, %s186
      %p188 = scmp.eq.s32.totalorder %s31, 0
      %p189 = por %p187, %p188
      %s191 = sadd.s32 %s190, 1
      %p194 = scmp.eq.s32.totalorder %s25, 1
      %p195 = scmp.ne.s32.totalorder %s190, %s192
      %p196 = scmp.eq.s32.totalorder %s25, 0
      %p197 = por %p195, %p196
      %p198 = scmp.ne.s32.totalorder %s190, %s192
      %p199 = scmp.eq.s32.totalorder %s30, 1
      %p200 = por %p198, %p199
      %p201 = scmp.ne.s32.totalorder %s192, %s193
      %p202 = scmp.eq.s32.totalorder %s30, 0
      %p203 = por %p201, %p202
      %p204 = scmp.ne.s32.totalorder %s192, %s193
      %p205 = scmp.eq.s32.totalorder %s31, 1
      %p206 = por %p204, %p205
      %p208 = scmp.ne.s32.totalorder %s193, %s207
      %p209 = scmp.eq.s32.totalorder %s31, 0
      %p210 = por %p208, %p209
      %s212 = sadd.s32 %s211, 1
      %p215 = scmp.eq.s32.totalorder %s25, 1
      %p216 = scmp.ne.s32.totalorder %s211, %s213
      %p217 = scmp.eq.s32.totalorder %s25, 0
      %p218 = por %p216, %p217
      %p219 = scmp.ne.s32.totalorder %s211, %s213
      %p220 = scmp.eq.s32.totalorder %s30, 1
      %p221 = por %p219, %p220
      %p222 = scmp.ne.s32.totalorder %s213, %s214
      %p223 = scmp.eq.s32.totalorder %s30, 0
      %p224 = por %p222, %p223
      %p225 = scmp.ne.s32.totalorder %s213, %s214
      %p226 = scmp.eq.s32.totalorder %s31, 1
      %p227 = por %p225, %p226
      %p229 = scmp.ne.s32.totalorder %s214, %s228
      %p230 = scmp.eq.s32.totalorder %s31, 0
      %p231 = por %p229, %p230
      %s233 = sadd.s32 %s232, 1
      %p236 = scmp.eq.s32.totalorder %s25, 1
      %p237 = scmp.ne.s32.totalorder %s232, %s234
      %p238 = scmp.eq.s32.totalorder %s25, 0
      %p239 = por %p237, %p238
      %p240 = scmp.ne.s32.totalorder %s232, %s234
      %p241 = scmp.eq.s32.totalorder %s30, 1
      %p242 = por %p240, %p241
      %p243 = scmp.ne.s32.totalorder %s234, %s235
      %p244 = scmp.eq.s32.totalorder %s30, 0
      %p245 = por %p243, %p244
      %p246 = scmp.ne.s32.totalorder %s234, %s235
      %p247 = scmp.eq.s32.totalorder %s31, 1
      %p248 = por %p246, %p247
      %p250 = scmp.ne.s32.totalorder %s235, %s249
      %p251 = scmp.eq.s32.totalorder %s31, 0
      %p252 = por %p250, %p251
      %s254 = sadd.s32 %s253, 1
      %p257 = scmp.eq.s32.totalorder %s25, 1
      %p258 = scmp.ne.s32.totalorder %s253, %s255
      %p259 = scmp.eq.s32.totalorder %s25, 0
      %p260 = por %p258, %p259
      %p261 = scmp.ne.s32.totalorder %s253, %s255
      %p262 = scmp.eq.s32.totalorder %s30, 1
      %p263 = por %p261, %p262
      %p264 = scmp.ne.s32.totalorder %s255, %s256
      %p265 = scmp.eq.s32.totalorder %s30, 0
      %p266 = por %p264, %p265
      %p267 = scmp.ne.s32.totalorder %s255, %s256
      %p268 = scmp.eq.s32.totalorder %s31, 1
      %p269 = por %p267, %p268
      %p271 = scmp.ne.s32.totalorder %s256, %s270
      %p272 = scmp.eq.s32.totalorder %s31, 0
      %p273 = por %p271, %p272
      %s275 = sadd.s32 %s274, 1
      %p278 = scmp.eq.s32.totalorder %s25, 1
      %p279 = scmp.ne.s32.totalorder %s274, %s276
      %p280 = scmp.eq.s32.totalorder %s25, 0
      %p281 = por %p279, %p280
      %p282 = scmp.ne.s32.totalorder %s274, %s276
      %p283 = scmp.eq.s32.totalorder %s30, 1
      %p284 = por %p282, %p283
      %p285 = scmp.ne.s32.totalorder %s276, %s277
      %p286 = scmp.eq.s32.totalorder %s30, 0
      %p287 = por %p285, %p286
      %p288 = scmp.ne.s32.totalorder %s276, %s277
      %p289 = scmp.eq.s32.totalorder %s31, 1
      %p290 = por %p288, %p289
      %p292 = scmp.ne.s32.totalorder %s277, %s291
      %p293 = scmp.eq.s32.totalorder %s31, 0
      %p294 = por %p292, %p293
      %s296 = sadd.s32 %s295, 1
      %p299 = scmp.eq.s32.totalorder %s25, 1
      %p300 = scmp.ne.s32.totalorder %s295, %s297
      %p301 = scmp.eq.s32.totalorder %s25, 0
      %p302 = por %p300, %p301
      %p303 = scmp.ne.s32.totalorder %s295, %s297
      %p304 = scmp.eq.s32.totalorder %s30, 1
      %p305 = por %p303, %p304
      %p306 = scmp.ne.s32.totalorder %s297, %s298
      %p307 = scmp.eq.s32.totalorder %s30, 0
      %p308 = por %p306, %p307
      %p309 = scmp.ne.s32.totalorder %s297, %s298
      %p310 = scmp.eq.s32.totalorder %s31, 1
      %p311 = por %p309, %p310
      %p313 = scmp.ne.s32.totalorder %s298, %s312
      %p314 = scmp.eq.s32.totalorder %s31, 0
      %p315 = por %p313, %p314
      %s316 = ssub.s32 %s25, %s32
      %p317 = scmp.eq.s32.totalorder %s316, 0
      %s319 = sadd.s32 %s318, 1
      %s320 = scalar_select %p317, %s318, %s319
      %p323 = pneg %p317
      %p324 = scmp.eq.s32.totalorder %s25, 1
      %p325 = por %p323, %p324
      %p326 = scmp.ne.s32.totalorder %s318, %s321
      %p327 = scmp.eq.s32.totalorder %s25, 0
      %p328 = por %p326, %p327
      %p329 = scmp.ne.s32.totalorder %s318, %s321
      %p330 = scmp.eq.s32.totalorder %s30, 1
      %p331 = por %p329, %p330
      %p332 = scmp.ne.s32.totalorder %s321, %s322
      %p333 = scmp.eq.s32.totalorder %s30, 0
      %p334 = por %p332, %p333
      %p335 = scmp.ne.s32.totalorder %s321, %s322
      %p336 = scmp.eq.s32.totalorder %s31, 1
      %p337 = por %p335, %p336
      %p339 = scmp.ne.s32.totalorder %s322, %s338
      %p340 = scmp.eq.s32.totalorder %s31, 0
      %p341 = por %p339, %p340
      %p342 = scmp.le.s32.totalorder 1, %s25
      %p343 = scmp.lt.s32.totalorder %s25, 3
      %p344 = pnand %p342, %p343
      %p345 = pneg %p344
      // Predicated region
      $region9: #{tpu_custom_call.1} parent=5 // pred_check
        _
      $region10: #{tpu_custom_call.1} parent=5 // pred_check_branch
        %347 = sbr.rel (%p344) target = $region12
      $region11: #{tpu_custom_call.1} parent=5 // pred_region
        %s348 = ssub.s32 %s25, 1
        // Predicated region
        $region13: #{tpu_custom_call.1} parent=11 // pred_check
          %p349 = pneg %p98
        $region14: #{tpu_custom_call.1} parent=11 // pred_check_branch
          %351 = sbr.rel (%p349) target = $region16
        $region15: #{tpu_custom_call.1} parent=11 // pred_region
          _
        $region16: #{tpu_custom_call.1} parent=11 // pred_fallthru
          _
        // Predicated region
        $region17: #{tpu_custom_call.1} parent=11 // pred_check
          %p352 = pneg %p119
        $region18: #{tpu_custom_call.1} parent=11 // pred_check_branch
          %354 = sbr.rel (%p352) target = $region20
        $region19: #{tpu_custom_call.1} parent=11 // pred_region
          _
        $region20: #{tpu_custom_call.1} parent=11 // pred_fallthru
          _
        // Predicated region
        $region21: #{tpu_custom_call.1} parent=11 // pred_check
          %p355 = pneg %p140
        $region22: #{tpu_custom_call.1} parent=11 // pred_check_branch
          %357 = sbr.rel (%p355) target = $region24
        $region23: #{tpu_custom_call.1} parent=11 // pred_region
          _
        $region24: #{tpu_custom_call.1} parent=11 // pred_fallthru
          _
        // Predicated region
        $region25: #{tpu_custom_call.1} parent=11 // pred_check
          %p358 = pneg %p161
        $region26: #{tpu_custom_call.1} parent=11 // pred_check_branch
          %360 = sbr.rel (%p358) target = $region28
        $region27: #{tpu_custom_call.1} parent=11 // pred_region
          _
        $region28: #{tpu_custom_call.1} parent=11 // pred_fallthru
          _
        // Predicated region
        $region29: #{tpu_custom_call.1} parent=11 // pred_check
          %p361 = pneg %p182
        $region30: #{tpu_custom_call.1} parent=11 // pred_check_branch
          %363 = sbr.rel (%p361) target = $region32
        $region31: #{tpu_custom_call.1} parent=11 // pred_region
          _
        $region32: #{tpu_custom_call.1} parent=11 // pred_fallthru
          _
        // Predicated region
        $region33: #{tpu_custom_call.1} parent=11 // pred_check
          %p364 = pneg %p203
        $region34: #{tpu_custom_call.1} parent=11 // pred_check_branch
          %366 = sbr.rel (%p364) target = $region36
        $region35: #{tpu_custom_call.1} parent=11 // pred_region
          _
        $region36: #{tpu_custom_call.1} parent=11 // pred_fallthru
          _
        // Predicated region
        $region37: #{tpu_custom_call.1} parent=11 // pred_check
          %p367 = pneg %p224
        $region38: #{tpu_custom_call.1} parent=11 // pred_check_branch
          %369 = sbr.rel (%p367) target = $region40
        $region39: #{tpu_custom_call.1} parent=11 // pred_region
          _
        $region40: #{tpu_custom_call.1} parent=11 // pred_fallthru
          _
        // Predicated region
        $region41: #{tpu_custom_call.1} parent=11 // pred_check
          %p370 = pneg %p245
        $region42: #{tpu_custom_call.1} parent=11 // pred_check_branch
          %372 = sbr.rel (%p370) target = $region44
        $region43: #{tpu_custom_call.1} parent=11 // pred_region
          _
        $region44: #{tpu_custom_call.1} parent=11 // pred_fallthru
          _
        // Predicated region
        $region45: #{tpu_custom_call.1} parent=11 // pred_check
          %p373 = pneg %p266
        $region46: #{tpu_custom_call.1} parent=11 // pred_check_branch
          %375 = sbr.rel (%p373) target = $region48
        $region47: #{tpu_custom_call.1} parent=11 // pred_region
          _
        $region48: #{tpu_custom_call.1} parent=11 // pred_fallthru
          _
        // Predicated region
        $region49: #{tpu_custom_call.1} parent=11 // pred_check
          %p376 = pneg %p287
        $region50: #{tpu_custom_call.1} parent=11 // pred_check_branch
          %378 = sbr.rel (%p376) target = $region52
        $region51: #{tpu_custom_call.1} parent=11 // pred_region
          _
        $region52: #{tpu_custom_call.1} parent=11 // pred_fallthru
          _
        // Predicated region
        $region53: #{tpu_custom_call.1} parent=11 // pred_check
          %p379 = pneg %p308
        $region54: #{tpu_custom_call.1} parent=11 // pred_check_branch
          %381 = sbr.rel (%p379) target = $region56
        $region55: #{tpu_custom_call.1} parent=11 // pred_region
          _
        $region56: #{tpu_custom_call.1} parent=11 // pred_fallthru
          _
      $region12: #{tpu_custom_call.1} parent=5 // pred_fallthru
        _
      %p382 = scmp.lt.s32.totalorder %s25, 2
      // Predicated region
      $region57: #{tpu_custom_call.1} parent=5 // pred_check
        %p383 = pneg %p382
      $region58: #{tpu_custom_call.1} parent=5 // pred_check_branch
        %385 = sbr.rel (%p383) target = $region60
      $region59: #{tpu_custom_call.1} parent=5 // pred_region
        // Predicated region
        $region61: #{tpu_custom_call.1} parent=59 // pred_check
          %p386 = pneg %p45
        $region62: #{tpu_custom_call.1} parent=59 // pred_check_branch
          %388 = sbr.rel (%p386) target = $region64
        $region63: #{tpu_custom_call.1} parent=59 // pred_region
          %s389 = sand.u32 %s35, 1
          %s390 = scalar_lea.sflag [#allocation3], %s389
          %s391 = sand.u32 %s35, 1
          %s392 = smul.addr %s391, 64
          %s393 = scalar_lea.vmem [#allocation2], %s392
          %s395 = ssub.s32 1024, 1024
          %396 = vsyncadd %s390, %s395
          %s397 = smul.addr %s25, 8
          %s398 = smul.addr %s397, 128
          %s399 = scalar_lea.hbm %s0, %s398
          %s400 = sshll.u32 %s393, 4
          %s401 = int_to_ptr.vmem [resolvable:$true] %s400
          %406 = dma.hbm_to_vmem [thread:$0]  %s399, 1024, %s401, %s390, 256, 256, 16
        $region64: #{tpu_custom_call.1} parent=59 // pred_fallthru
          _
        // Predicated region
        $region65: #{tpu_custom_call.1} parent=59 // pred_check
          %p407 = pneg %p71
        $region66: #{tpu_custom_call.1} parent=59 // pred_check_branch
          %409 = sbr.rel (%p407) target = $region68
        $region67: #{tpu_custom_call.1} parent=59 // pred_region
          %p410 = scmp.lt.s32.totalorder %s25, 1
          %s411 = scalar_select %p410, %s25, 1
          %s412 = smul.addr %s411, 8
          %s413 = smul.addr %s412, 8
          %s414 = scalar_lea.vmem %s1, %s413
        $region68: #{tpu_custom_call.1} parent=59 // pred_fallthru
          _
      $region60: #{tpu_custom_call.1} parent=5 // pred_fallthru
        _
      %p415 = scmp.le.s32.totalorder 1, %s25
      %p416 = scmp.lt.s32.totalorder %s25, 3
      %p417 = pnand %p415, %p416
      %p418 = pneg %p417
      // Predicated region
      $region69: #{tpu_custom_call.1} parent=5 // pred_check
        _
      $region70: #{tpu_custom_call.1} parent=5 // pred_check_branch
        %420 = sbr.rel (%p417) target = $region72
      $region71: #{tpu_custom_call.1} parent=5 // pred_region
        %s421 = ssub.s32 %s25, 1
        %s422 = sand.u32 %s38, 1
        %s423 = scalar_lea.sflag [#allocation3], %s422
        %s424 = sand.u32 %s38, 1
        %s425 = smul.addr %s424, 64
        %s426 = scalar_lea.vmem [#allocation2], %s425
        // Predicated region
        $region73: #{tpu_custom_call.1} parent=71 // pred_check
          %p427 = pneg %p51
        $region74: #{tpu_custom_call.1} parent=71 // pred_check_branch
          %429 = sbr.rel (%p427) target = $region76
        $region75: #{tpu_custom_call.1} parent=71 // pred_region
          %430 = dma.done %s423, 1024
        $region76: #{tpu_custom_call.1} parent=71 // pred_fallthru
          _
        %s431 = sand.u32 %s38, 1
        %s432 = scalar_lea.sflag [#allocation3], %s431
        %s433 = sand.u32 %s38, 1
        %s434 = smul.addr %s433, 64
        %s435 = scalar_lea.vmem [#allocation2], %s434
        %p436 = pneg %p51
        %p437 = pneg %p48
        %p438 = scmp.lt.s32.totalorder %s30, 1
        %s439 = scalar_select %p438, %s30, 1
        %s440 = smul.addr %s439, 8
        %s441 = smul.addr %s440, 8
        %s442 = scalar_lea.vmem %s1, %s441
        %p443 = pneg %p77
        %p444 = pneg %p74
        %p445 = pneg %p98
        %p446 = pneg %p95
        %p447 = pneg %p119
        %p448 = pneg %p116
        %p449 = pneg %p140
        %p450 = pneg %p137
        %p451 = pneg %p161
        %p452 = pneg %p158
        %p453 = pneg %p182
        %p454 = pneg %p179
        %p455 = pneg %p203
        %p456 = pneg %p200
        %p457 = pneg %p224
        %p458 = pneg %p221
        %p459 = pneg %p245
        %p460 = pneg %p242
        %p461 = pneg %p266
        %p462 = pneg %p263
        %p463 = pneg %p287
        %p464 = pneg %p284
        %p465 = pneg %p308
        %p466 = pneg %p305
        %p467 = pneg %p334
        %p468 = pneg %p331
        %s469 = sand.u32 %s321, 1
        %s470 = scalar_lea.sflag [#allocation4], %s469
        %s471 = sand.u32 %s321, 1
        %s472 = smul.addr %s471, 64
        %s473 = scalar_lea.vmem [#allocation5], %s472
        %p474 = scmp.lt.s32.totalorder %s30, 1
        %s475 = scalar_select %p474, %s30, 1
        %s476 = smul.addr %s475, 8
        %s477 = smul.addr %s476, 8
        %s478 = scalar_lea.vmem %s1, %s477
        %v480 = vld [vmem:[%s426] sm:$0xff]
        %v481 = vld [vmem:[%s426 + $0x8] sm:$0xff]
        %v482 = vld [vmem:[%s426 + $0x10] sm:$0xff]
        %v483 = vld [vmem:[%s426 + $0x18] sm:$0xff]
        %v484 = vld [vmem:[%s426 + $0x20] sm:$0xff]
        %v485 = vld [vmem:[%s426 + $0x28] sm:$0xff]
        %v486 = vld [vmem:[%s426 + $0x30] sm:$0xff]
        %v487 = vld [vmem:[%s426 + $0x38] sm:$0xff]
        %v488 = vld [vmem:[%s478] sm:$0xff]
        %v489 = vld [vmem:[%s478 + $0x8] sm:$0xff]
        %v490 = vld [vmem:[%s478 + $0x10] sm:$0xff]
        %v491 = vld [vmem:[%s478 + $0x18] sm:$0xff]
        %v492 = vld [vmem:[%s478 + $0x20] sm:$0xff]
        %v493 = vld [vmem:[%s478 + $0x28] sm:$0xff]
        %v494 = vld [vmem:[%s478 + $0x30] sm:$0xff]
        %v495 = vld [vmem:[%s478 + $0x38] sm:$0xff]
        %vm496 = vcmask 261120
        %v498 = vsel %vm496, 0.03125, 0
        %500 = vmatprep.subr.mxu0 %v481
        %501 = vmatpush1.msra.mxu0 %v480
        %502 = vmatprep.subr.mxu0 %v483
        %503 = vmatpush1.msra.mxu0 %v482
        %504 = vmatprep.subr.mxu0 %v485
        %505 = vmatpush1.msra.mxu0 %v484
        %506 = vmatprep.subr.mxu0 %v487
        %507 = vmatpush1.msra.mxu0 %v486
        %508 = vmatprep.subr.mxu0 0.0
        %509 = vmatpush1.msra.mxu0 0.0
        %510 = vmatprep.subr.mxu0 0.0
        %511 = vmatpush1.msra.mxu0 0.0
        %512 = vmatprep.subr.mxu0 0.0
        %513 = vmatpush1.msra.mxu0 0.0
        %514 = vmatprep.subr.mxu0 0.0
        %515 = vmatpush1.msra.mxu0 0.0
        %516 = vmatprep.subr.mxu0 0.0
        %517 = vmatpush1.msra.mxu0 0.0
        %518 = vmatprep.subr.mxu0 0.0
        %519 = vmatpush1.msra.mxu0 0.0
        %520 = vmatprep.subr.mxu0 0.0
        %521 = vmatpush1.msra.mxu0 0.0
        %522 = vmatprep.subr.mxu0 0.0
        %523 = vmatpush1.msra.mxu0 0.0
        %524 = vmatprep.subr.mxu0 0.0
        %525 = vmatpush1.msra.mxu0 0.0
        %526 = vmatprep.subr.mxu0 0.0
        %527 = vmatpush1.msra.mxu0 0.0
        %528 = vmatprep.subr.mxu0 0.0
        %529 = vmatpush1.msra.mxu0 0.0
        %530 = vmatprep.subr.mxu0 0.0
        %531 = vmatpush1.msra.mxu0 0.0
        %532 = vmatprep.subr.mxu0 0.0
        %533 = vmatpush1.msra.mxu0 0.0
        %534 = vmatprep.subr.mxu0 0.0
        %535 = vmatpush1.msra.mxu0 0.0
        %536 = vmatprep.subr.mxu0 0.0
        %537 = vmatpush1.msra.mxu0 0.0
        %538 = vmatprep.subr.mxu0 0.0
        %539 = vmatpush1.msra.mxu0 0.0
        %540 = vmatprep.subr.mxu0 0.0
        %541 = vmatpush1.msra.mxu0 0.0
        %542 = vmatprep.subr.mxu0 0.0
        %543 = vmatpush1.msra.mxu0 0.0
        %544 = vmatprep.subr.mxu0 0.0
        %545 = vmatpush1.msra.mxu0 0.0
        %546 = vmatprep.subr.mxu0 0.0
        %547 = vmatpush1.msra.mxu0 0.0
        %548 = vmatprep.subr.mxu0 0.0
        %549 = vmatpush1.msra.mxu0 0.0
        %550 = vmatprep.subr.mxu0 0.0
        %551 = vmatpush1.msra.mxu0 0.0
        %552 = vmatprep.subr.mxu0 0.0
        %553 = vmatpush1.msra.mxu0 0.0
        %554 = vmatprep.subr.mxu0 0.0
        %555 = vmatpush1.msra.mxu0 0.0
        %556 = vmatprep.subr.mxu0 0.0
        %557 = vmatpush1.msra.mxu0 0.0
        %558 = vmatprep.subr.mxu0 0.0
        %559 = vmatpush1.msra.mxu0 0.0
        %560 = vmatprep.subr.mxu0 0.0
        %561 = vmatpush1.msra.mxu0 0.0
        %562 = vmatprep.subr.mxu0 0.0
        %563 = vmatpush1.msra.mxu0 0.0
        %564 = vmatprep.mubr.f32.mxu0 0.0
        %565 = vmatmul.mubr.f32.gmra.mrb[0].mxu0 %v498
        %v566 = vpop.f32.mrb[0].mxu0
        %v567 = vadd.f32 0.0, %v566
        %v568 = vpop.f32.mrb[0].mxu0
        %v569 = vadd.f32 0.0, %v568
        %570 = vdwg.mxu0
        %v571 = vlaneseq
        %v572 = vshrl.u32 %v571, 7
        %v573 = vsub.s32 0, %v572
        %v574 = vrot.slane %v567, %v573
        %v575 = vlaneseq
        %v576 = vshrl.u32 %v575, 7
        %v577 = vsub.s32 0, %v576
        %v578 = vrot.slane %v569, %v577
        %v579 = vsub.f32 %v480, %v574
        %v580 = vsub.f32 %v481, %v578
        %v581 = vsub.f32 %v482, %v574
        %v582 = vsub.f32 %v483, %v578
        %v583 = vsub.f32 %v484, %v574
        %v584 = vsub.f32 %v485, %v578
        %v585 = vsub.f32 %v486, %v574
        %v586 = vsub.f32 %v487, %v578
        %v587 = vmul.f32 %v579, %v579
        %v588 = vmul.f32 %v580, %v580
        %v589 = vmul.f32 %v581, %v581
        %v590 = vmul.f32 %v582, %v582
        %v591 = vmul.f32 %v583, %v583
        %v592 = vmul.f32 %v584, %v584
        %v593 = vmul.f32 %v585, %v585
        %v594 = vmul.f32 %v586, %v586
        %595 = vmatprep.subr.mxu0 %v588
        %596 = vmatpush1.msra.mxu0 %v587
        %597 = vmatprep.subr.mxu0 %v590
        %598 = vmatpush1.msra.mxu0 %v589
        %599 = vmatprep.subr.mxu0 %v592
        %600 = vmatpush1.msra.mxu0 %v591
        %601 = vmatprep.subr.mxu0 %v594
        %602 = vmatpush1.msra.mxu0 %v593
        %603 = vmatprep.subr.mxu0 0.0
        %604 = vmatpush1.msra.mxu0 0.0
        %605 = vmatprep.subr.mxu0 0.0
        %606 = vmatpush1.msra.mxu0 0.0
        %607 = vmatprep.subr.mxu0 0.0
        %608 = vmatpush1.msra.mxu0 0.0
        %609 = vmatprep.subr.mxu0 0.0
        %610 = vmatpush1.msra.mxu0 0.0
        %611 = vmatprep.subr.mxu0 0.0
        %612 = vmatpush1.msra.mxu0 0.0
        %613 = vmatprep.subr.mxu0 0.0
        %614 = vmatpush1.msra.mxu0 0.0
        %615 = vmatprep.subr.mxu0 0.0
        %616 = vmatpush1.msra.mxu0 0.0
        %617 = vmatprep.subr.mxu0 0.0
        %618 = vmatpush1.msra.mxu0 0.0
        %619 = vmatprep.subr.mxu0 0.0
        %620 = vmatpush1.msra.mxu0 0.0
        %621 = vmatprep.subr.mxu0 0.0
        %622 = vmatpush1.msra.mxu0 0.0
        %623 = vmatprep.subr.mxu0 0.0
        %624 = vmatpush1.msra.mxu0 0.0
        %625 = vmatprep.subr.mxu0 0.0
        %626 = vmatpush1.msra.mxu0 0.0
        %627 = vmatprep.subr.mxu0 0.0
        %628 = vmatpush1.msra.mxu0 0.0
        %629 = vmatprep.subr.mxu0 0.0
        %630 = vmatpush1.msra.mxu0 0.0
        %631 = vmatprep.subr.mxu0 0.0
        %632 = vmatpush1.msra.mxu0 0.0
        %633 = vmatprep.subr.mxu0 0.0
        %634 = vmatpush1.msra.mxu0 0.0
        %635 = vmatprep.subr.mxu0 0.0
        %636 = vmatpush1.msra.mxu0 0.0
        %637 = vmatprep.subr.mxu0 0.0
        %638 = vmatpush1.msra.mxu0 0.0
        %639 = vmatprep.subr.mxu0 0.0
        %640 = vmatpush1.msra.mxu0 0.0
        %641 = vmatprep.subr.mxu0 0.0
        %642 = vmatpush1.msra.mxu0 0.0
        %643 = vmatprep.subr.mxu0 0.0
        %644 = vmatpush1.msra.mxu0 0.0
        %645 = vmatprep.subr.mxu0 0.0
        %646 = vmatpush1.msra.mxu0 0.0
        %647 = vmatprep.subr.mxu0 0.0
        %648 = vmatpush1.msra.mxu0 0.0
        %649 = vmatprep.subr.mxu0 0.0
        %650 = vmatpush1.msra.mxu0 0.0
        %651 = vmatprep.subr.mxu0 0.0
        %652 = vmatpush1.msra.mxu0 0.0
        %653 = vmatprep.subr.mxu0 0.0
        %654 = vmatpush1.msra.mxu0 0.0
        %655 = vmatprep.subr.mxu0 0.0
        %656 = vmatpush1.msra.mxu0 0.0
        %657 = vmatprep.subr.mxu0 0.0
        %658 = vmatpush1.msra.mxu0 0.0
        %659 = vmatprep.mubr.f32.mxu0 0.0
        %660 = vmatmul.mubr.f32.gmra.mrb[0].mxu0 %v498
        %v661 = vpop.f32.mrb[0].mxu0
        %v662 = vadd.f32 0.0, %v661
        %v663 = vpop.f32.mrb[0].mxu0
        %v664 = vadd.f32 0.0, %v663
        %665 = vdwg.mxu0
        %v666 = vadd.f32 %v662, 1e-05
        %v667 = vadd.f32 %v664, 1e-05
        %v668 = vrsqrt.pop %v666
        %v669 = vrsqrt.pop %v667
        %v670 = vlaneseq
        %v671 = vshrl.u32 %v670, 7
        %v672 = vsub.s32 0, %v671
        %v673 = vrot.slane %v668, %v672
        %v674 = vlaneseq
        %v675 = vshrl.u32 %v674, 7
        %v676 = vsub.s32 0, %v675
        %v677 = vrot.slane %v669, %v676
        %v678 = vmul.f32 %v579, %v673
        %v679 = vmul.f32 %v580, %v677
        %v680 = vmul.f32 %v581, %v673
        %v681 = vmul.f32 %v582, %v677
        %v682 = vmul.f32 %v583, %v673
        %v683 = vmul.f32 %v584, %v677
        %v684 = vmul.f32 %v585, %v673
        %v685 = vmul.f32 %v586, %v677
        %v686 = vpack.c.bf16 %v680, %v678
        %v687 = vpack.c.bf16 %v681, %v679
        %v688 = vpack.c.bf16 %v684, %v682
        %v689 = vpack.c.bf16 %v685, %v683
        %690 = vmatprep.subr.mxu0 %v489
        %691 = vmatpush1.msra.mxu0 %v488
        %692 = vmatprep.subr.mxu0 %v491
        %693 = vmatpush1.msra.mxu0 %v490
        %694 = vmatprep.subr.mxu0 %v493
        %695 = vmatpush1.msra.mxu0 %v492
        %696 = vmatprep.subr.mxu0 %v495
        %697 = vmatpush1.msra.mxu0 %v494
        %698 = vmatprep.subr.mxu0 0.0
        %699 = vmatpush1.msra.mxu0 0.0
        %700 = vmatprep.subr.mxu0 0.0
        %701 = vmatpush1.msra.mxu0 0.0
        %702 = vmatprep.subr.mxu0 0.0
        %703 = vmatpush1.msra.mxu0 0.0
        %704 = vmatprep.subr.mxu0 0.0
        %705 = vmatpush1.msra.mxu0 0.0
        %706 = vmatprep.subr.mxu0 0.0
        %707 = vmatpush1.msra.mxu0 0.0
        %708 = vmatprep.subr.mxu0 0.0
        %709 = vmatpush1.msra.mxu0 0.0
        %710 = vmatprep.subr.mxu0 0.0
        %711 = vmatpush1.msra.mxu0 0.0
        %712 = vmatprep.subr.mxu0 0.0
        %713 = vmatpush1.msra.mxu0 0.0
        %714 = vmatprep.subr.mxu0 0.0
        %715 = vmatpush1.msra.mxu0 0.0
        %716 = vmatprep.subr.mxu0 0.0
        %717 = vmatpush1.msra.mxu0 0.0
        %718 = vmatprep.subr.mxu0 0.0
        %719 = vmatpush1.msra.mxu0 0.0
        %720 = vmatprep.subr.mxu0 0.0
        %721 = vmatpush1.msra.mxu0 0.0
        %722 = vmatprep.subr.mxu0 0.0
        %723 = vmatpush1.msra.mxu0 0.0
        %724 = vmatprep.subr.mxu0 0.0
        %725 = vmatpush1.msra.mxu0 0.0
        %726 = vmatprep.subr.mxu0 0.0
        %727 = vmatpush1.msra.mxu0 0.0
        %728 = vmatprep.subr.mxu0 0.0
        %729 = vmatpush1.msra.mxu0 0.0
        %730 = vmatprep.subr.mxu0 0.0
        %731 = vmatpush1.msra.mxu0 0.0
        %732 = vmatprep.subr.mxu0 0.0
        %733 = vmatpush1.msra.mxu0 0.0
        %734 = vmatprep.subr.mxu0 0.0
        %735 = vmatpush1.msra.mxu0 0.0
        %736 = vmatprep.subr.mxu0 0.0
        %737 = vmatpush1.msra.mxu0 0.0
        %738 = vmatprep.subr.mxu0 0.0
        %739 = vmatpush1.msra.mxu0 0.0
        %740 = vmatprep.subr.mxu0 0.0
        %741 = vmatpush1.msra.mxu0 0.0
        %742 = vmatprep.subr.mxu0 0.0
        %743 = vmatpush1.msra.mxu0 0.0
        %744 = vmatprep.subr.mxu0 0.0
        %745 = vmatpush1.msra.mxu0 0.0
        %746 = vmatprep.subr.mxu0 0.0
        %747 = vmatpush1.msra.mxu0 0.0
        %748 = vmatprep.subr.mxu0 0.0
        %749 = vmatpush1.msra.mxu0 0.0
        %750 = vmatprep.subr.mxu0 0.0
        %751 = vmatpush1.msra.mxu0 0.0
        %752 = vmatprep.subr.mxu0 0.0
        %753 = vmatpush1.msra.mxu0 0.0
        %754 = vmatprep.mubr.f32.mxu0 0.0
        %755 = vmatmul.mubr.f32.gmra.mrb[0].mxu0 %v498
        %v756 = vpop.f32.mrb[0].mxu0
        %v757 = vadd.f32 0.0, %v756
        %v758 = vpop.f32.mrb[0].mxu0
        %v759 = vadd.f32 0.0, %v758
        %760 = vdwg.mxu0
        %v761 = vlaneseq
        %v762 = vshrl.u32 %v761, 7
        %v763 = vsub.s32 0, %v762
        %v764 = vrot.slane %v757, %v763
        %v765 = vlaneseq
        %v766 = vshrl.u32 %v765, 7
        %v767 = vsub.s32 0, %v766
        %v768 = vrot.slane %v759, %v767
        %v769 = vsub.f32 %v488, %v764
        %v770 = vsub.f32 %v489, %v768
        %v771 = vsub.f32 %v490, %v764
        %v772 = vsub.f32 %v491, %v768
        %v773 = vsub.f32 %v492, %v764
        %v774 = vsub.f32 %v493, %v768
        %v775 = vsub.f32 %v494, %v764
        %v776 = vsub.f32 %v495, %v768
        %v777 = vmul.f32 %v769, %v769
        %v778 = vmul.f32 %v770, %v770
        %v779 = vmul.f32 %v771, %v771
        %v780 = vmul.f32 %v772, %v772
        %v781 = vmul.f32 %v773, %v773
        %v782 = vmul.f32 %v774, %v774
        %v783 = vmul.f32 %v775, %v775
        %v784 = vmul.f32 %v776, %v776
        %785 = vmatprep.subr.mxu0 %v778
        %786 = vmatpush1.msra.mxu0 %v777
        %787 = vmatprep.subr.mxu0 %v780
        %788 = vmatpush1.msra.mxu0 %v779
        %789 = vmatprep.subr.mxu0 %v782
        %790 = vmatpush1.msra.mxu0 %v781
        %791 = vmatprep.subr.mxu0 %v784
        %792 = vmatpush1.msra.mxu0 %v783
        %793 = vmatprep.subr.mxu0 0.0
        %794 = vmatpush1.msra.mxu0 0.0
        %795 = vmatprep.subr.mxu0 0.0
        %796 = vmatpush1.msra.mxu0 0.0
        %797 = vmatprep.subr.mxu0 0.0
        %798 = vmatpush1.msra.mxu0 0.0
        %799 = vmatprep.subr.mxu0 0.0
        %800 = vmatpush1.msra.mxu0 0.0
        %801 = vmatprep.subr.mxu0 0.0
        %802 = vmatpush1.msra.mxu0 0.0
        %803 = vmatprep.subr.mxu0 0.0
        %804 = vmatpush1.msra.mxu0 0.0
        %805 = vmatprep.subr.mxu0 0.0
        %806 = vmatpush1.msra.mxu0 0.0
        %807 = vmatprep.subr.mxu0 0.0
        %808 = vmatpush1.msra.mxu0 0.0
        %809 = vmatprep.subr.mxu0 0.0
        %810 = vmatpush1.msra.mxu0 0.0
        %811 = vmatprep.subr.mxu0 0.0
        %812 = vmatpush1.msra.mxu0 0.0
        %813 = vmatprep.subr.mxu0 0.0
        %814 = vmatpush1.msra.mxu0 0.0
        %815 = vmatprep.subr.mxu0 0.0
        %816 = vmatpush1.msra.mxu0 0.0
        %817 = vmatprep.subr.mxu0 0.0
        %818 = vmatpush1.msra.mxu0 0.0
        %819 = vmatprep.subr.mxu0 0.0
        %820 = vmatpush1.msra.mxu0 0.0
        %821 = vmatprep.subr.mxu0 0.0
        %822 = vmatpush1.msra.mxu0 0.0
        %823 = vmatprep.subr.mxu0 0.0
        %824 = vmatpush1.msra.mxu0 0.0
        %825 = vmatprep.subr.mxu0 0.0
        %826 = vmatpush1.msra.mxu0 0.0
        %827 = vmatprep.subr.mxu0 0.0
        %828 = vmatpush1.msra.mxu0 0.0
        %829 = vmatprep.subr.mxu0 0.0
        %830 = vmatpush1.msra.mxu0 0.0
        %831 = vmatprep.subr.mxu0 0.0
        %832 = vmatpush1.msra.mxu0 0.0
        %833 = vmatprep.subr.mxu0 0.0
        %834 = vmatpush1.msra.mxu0 0.0
        %835 = vmatprep.subr.mxu0 0.0
        %836 = vmatpush1.msra.mxu0 0.0
        %837 = vmatprep.subr.mxu0 0.0
        %838 = vmatpush1.msra.mxu0 0.0
        %839 = vmatprep.subr.mxu0 0.0
        %840 = vmatpush1.msra.mxu0 0.0
        %841 = vmatprep.subr.mxu0 0.0
        %842 = vmatpush1.msra.mxu0 0.0
        %843 = vmatprep.subr.mxu0 0.0
        %844 = vmatpush1.msra.mxu0 0.0
        %845 = vmatprep.subr.mxu0 0.0
        %846 = vmatpush1.msra.mxu0 0.0
        %847 = vmatprep.subr.mxu0 0.0
        %848 = vmatpush1.msra.mxu0 0.0
        %849 = vmatprep.mubr.f32.mxu0 0.0
        %850 = vmatmul.mubr.f32.gmra.mrb[0].mxu0 %v498
        %v851 = vpop.f32.mrb[0].mxu0
        %v852 = vadd.f32 0.0, %v851
        %v853 = vpop.f32.mrb[0].mxu0
        %v854 = vadd.f32 0.0, %v853
        %855 = vdwg.mxu0
        %v856 = vadd.f32 %v852, 1e-05
        %v857 = vadd.f32 %v854, 1e-05
        %v858 = vrsqrt.pop %v856
        %v859 = vrsqrt.pop %v857
        %v860 = vlaneseq
        %v861 = vshrl.u32 %v860, 7
        %v862 = vsub.s32 0, %v861
        %v863 = vrot.slane %v858, %v862
        %v864 = vlaneseq
        %v865 = vshrl.u32 %v864, 7
        %v866 = vsub.s32 0, %v865
        %v867 = vrot.slane %v859, %v866
        %v868 = vmul.f32 %v769, %v863
        %v869 = vmul.f32 %v770, %v867
        %v870 = vmul.f32 %v771, %v863
        %v871 = vmul.f32 %v772, %v867
        %v872 = vmul.f32 %v773, %v863
        %v873 = vmul.f32 %v774, %v867
        %v874 = vmul.f32 %v775, %v863
        %v875 = vmul.f32 %v776, %v867
        %v876 = vpack.c.bf16 %v870, %v868
        %v877 = vpack.c.bf16 %v871, %v869
        %v878 = vpack.c.bf16 %v874, %v872
        %v879 = vpack.c.bf16 %v875, %v873
        %v880 = vld [vmem:[%s2] sm:$0xf]
        %v881 = vld [vmem:[%s2 + $0x4] sm:$0xf]
        %v882 = vld [vmem:[%s2 + $0x8] sm:$0xf]
        %v883 = vld [vmem:[%s2 + $0xc] sm:$0xf]
        %v884 = vld [vmem:[%s3] sm:$0xff]
        %v885 = vld [vmem:[%s3 + $0x8] sm:$0xff]
        %v886 = vld [vmem:[%s3 + $0x10] sm:$0xff]
        %v887 = vld [vmem:[%s3 + $0x18] sm:$0xff]
        %889 = vset.pattern.permute.xlu0 0
        %890 = vperm.xlu0 %889, %v884
        %v891 = vpop.permute.xlu0 %890
        %894 = vset.pattern.permute.xlu0 0
        %895 = vperm.xlu0 %894, %v885
        %v896 = vpop.permute.xlu0 %895
        %899 = vset.pattern.permute.xlu0 0
        %900 = vperm.xlu0 %899, %v886
        %v901 = vpop.permute.xlu0 %900
        %904 = vset.pattern.permute.xlu0 0
        %905 = vperm.xlu0 %904, %v887
        %v906 = vpop.permute.xlu0 %905
        %v912 = vunpack.c.l.b16 %v880
        %v913 = vunpack.c.l.b16 %v881
        %v914 = vunpack.c.l.b16 %v882
        %v915 = vunpack.c.l.b16 %v883
        %v916 = vpack.c.b16 %v913, %v912
        %v917 = vpack.c.b16 %v915, %v914
        %v919 = vsel %vm496, %v916, 0
        %v922 = vsel %vm496, %v917, 0
        %924 = vmatprep.subr.bf16.mxu0 %v687
        %925 = vmatpush1.bf16.msra.mxu0 %v686
        %926 = vmatprep.subr.bf16.mxu0 %v689
        %927 = vmatpush1.bf16.msra.mxu0 %v688
        %928 = vmatprep.subr.bf16.mxu0 0
        %929 = vmatpush1.bf16.msra.mxu0 0
        %930 = vmatprep.subr.bf16.mxu0 0
        %931 = vmatpush1.bf16.msra.mxu0 0
        %932 = vmatprep.subr.bf16.mxu0 0
        %933 = vmatpush1.bf16.msra.mxu0 0
        %934 = vmatprep.subr.bf16.mxu0 0
        %935 = vmatpush1.bf16.msra.mxu0 0
        %936 = vmatprep.subr.bf16.mxu0 0
        %937 = vmatpush1.bf16.msra.mxu0 0
        %938 = vmatprep.subr.bf16.mxu0 0
        %939 = vmatpush1.bf16.msra.mxu0 0
        %940 = vmatprep.subr.bf16.mxu0 0
        %941 = vmatpush1.bf16.msra.mxu0 0
        %942 = vmatprep.subr.bf16.mxu0 0
        %943 = vmatpush1.bf16.msra.mxu0 0
        %944 = vmatprep.subr.bf16.mxu0 0
        %945 = vmatpush1.bf16.msra.mxu0 0
        %946 = vmatprep.subr.bf16.mxu0 0
        %947 = vmatpush1.bf16.msra.mxu0 0
        %948 = vmatprep.subr.bf16.mxu0 0
        %949 = vmatpush1.bf16.msra.mxu0 0
        %950 = vmatprep.subr.bf16.mxu0 0
        %951 = vmatpush1.bf16.msra.mxu0 0
        %952 = vmatprep.subr.bf16.mxu0 0
        %953 = vmatpush1.bf16.msra.mxu0 0
        %954 = vmatprep.subr.bf16.mxu0 0
        %955 = vmatpush1.bf16.msra.mxu0 0
        %956 = vmatprep.mubr.bf16.mxu0 0
        %957 = vmatmul.mubr.bf16.gmra.mrb[0].mxu0 %v919
        %v958 = vpop.f32.mrb[0].mxu0
        %v959 = vadd.f32 %v891, %v958
        %v960 = vpop.f32.mrb[0].mxu0
        %v961 = vadd.f32 %v891, %v960
        %v962 = vpop.f32.mrb[0].mxu0
        %v963 = vadd.f32 %v896, %v962
        %v964 = vpop.f32.mrb[0].mxu0
        %v965 = vadd.f32 %v896, %v964
        %966 = vmatprep.mubr.bf16.mxu0 0
        %967 = vmatmul.mubr.bf16.gmra.mrb[0].mxu0 %v922
        %v968 = vpop.f32.mrb[0].mxu0
        %v969 = vadd.f32 %v901, %v968
        %v970 = vpop.f32.mrb[0].mxu0
        %v971 = vadd.f32 %v901, %v970
        %v972 = vpop.f32.mrb[0].mxu0
        %v973 = vadd.f32 %v906, %v972
        %v974 = vpop.f32.mrb[0].mxu0
        %v975 = vadd.f32 %v906, %v974
        %976 = vdwg.mxu0
        %v977 = vld [vmem:[%s4] sm:$0xf]
        %v978 = vld [vmem:[%s4 + $0x4] sm:$0xf]
        %v979 = vld [vmem:[%s4 + $0x8] sm:$0xf]
        %v980 = vld [vmem:[%s4 + $0xc] sm:$0xf]
        %v981 = vld [vmem:[%s4 + $0x10] sm:$0xf]
        %v982 = vld [vmem:[%s4 + $0x14] sm:$0xf]
        %v983 = vld [vmem:[%s4 + $0x18] sm:$0xf]
        %v984 = vld [vmem:[%s4 + $0x1c] sm:$0xf]
        %v985 = vld [vmem:[%s5] sm:$0xff]
        %v986 = vld [vmem:[%s5 + $0x8] sm:$0xff]
        %v987 = vld [vmem:[%s5 + $0x10] sm:$0xff]
        %v988 = vld [vmem:[%s5 + $0x18] sm:$0xff]
        %v989 = vld [vmem:[%s5 + $0x20] sm:$0xff]
        %v990 = vld [vmem:[%s5 + $0x28] sm:$0xff]
        %v991 = vld [vmem:[%s5 + $0x30] sm:$0xff]
        %v992 = vld [vmem:[%s5 + $0x38] sm:$0xff]
        %994 = vset.pattern.permute.xlu0 0
        %995 = vperm.xlu0 %994, %v985
        %v996 = vpop.permute.xlu0 %995
        %999 = vset.pattern.permute.xlu0 0
        %1000 = vperm.xlu0 %999, %v986
        %v1001 = vpop.permute.xlu0 %1000
        %1004 = vset.pattern.permute.xlu0 0
        %1005 = vperm.xlu0 %1004, %v987
        %v1006 = vpop.permute.xlu0 %1005
        %1009 = vset.pattern.permute.xlu0 0
        %1010 = vperm.xlu0 %1009, %v988
        %v1011 = vpop.permute.xlu0 %1010
        %1014 = vset.pattern.permute.xlu0 0
        %1015 = vperm.xlu0 %1014, %v989
        %v1016 = vpop.permute.xlu0 %1015
        %1019 = vset.pattern.permute.xlu0 0
        %1020 = vperm.xlu0 %1019, %v990
        %v1021 = vpop.permute.xlu0 %1020
        %1024 = vset.pattern.permute.xlu0 0
        %1025 = vperm.xlu0 %1024, %v991
        %v1026 = vpop.permute.xlu0 %1025
        %1029 = vset.pattern.permute.xlu0 0
        %1030 = vperm.xlu0 %1029, %v992
        %v1031 = vpop.permute.xlu0 %1030
        %v1041 = vunpack.c.l.b16 %v977
        %v1042 = vunpack.c.l.b16 %v978
        %v1043 = vunpack.c.l.b16 %v979
        %v1044 = vunpack.c.l.b16 %v980
        %v1045 = vunpack.c.l.b16 %v981
        %v1046 = vunpack.c.l.b16 %v982
        %v1047 = vunpack.c.l.b16 %v983
        %v1048 = vunpack.c.l.b16 %v984
        %v1049 = vpack.c.b16 %v1042, %v1041
        %v1050 = vpack.c.b16 %v1044, %v1043
        %v1051 = vpack.c.b16 %v1046, %v1045
        %v1052 = vpack.c.b16 %v1048, %v1047
        %v1054 = vsel %vm496, %v1049, 0
        %v1057 = vsel %vm496, %v1050, 0
        %v1060 = vsel %vm496, %v1051, 0
        %v1063 = vsel %vm496, %v1052, 0
        %1065 = vmatprep.subr.bf16.mxu0 %v877
        %1066 = vmatpush1.bf16.msra.mxu0 %v876
        %1067 = vmatprep.subr.bf16.mxu0 %v879
        %1068 = vmatpush1.bf16.msra.mxu0 %v878
        %1069 = vmatprep.subr.bf16.mxu0 0
        %1070 = vmatpush1.bf16.msra.mxu0 0
        %1071 = vmatprep.subr.bf16.mxu0 0
        %1072 = vmatpush1.bf16.msra.mxu0 0
        %1073 = vmatprep.subr.bf16.mxu0 0
        %1074 = vmatpush1.bf16.msra.mxu0 0
        %1075 = vmatprep.subr.bf16.mxu0 0
        %1076 = vmatpush1.bf16.msra.mxu0 0
        %1077 = vmatprep.subr.bf16.mxu0 0
        %1078 = vmatpush1.bf16.msra.mxu0 0
        %1079 = vmatprep.subr.bf16.mxu0 0
        %1080 = vmatpush1.bf16.msra.mxu0 0
        %1081 = vmatprep.subr.bf16.mxu0 0
        %1082 = vmatpush1.bf16.msra.mxu0 0
        %1083 = vmatprep.subr.bf16.mxu0 0
        %1084 = vmatpush1.bf16.msra.mxu0 0
        %1085 = vmatprep.subr.bf16.mxu0 0
        %1086 = vmatpush1.bf16.msra.mxu0 0
        %1087 = vmatprep.subr.bf16.mxu0 0
        %1088 = vmatpush1.bf16.msra.mxu0 0
        %1089 = vmatprep.subr.bf16.mxu0 0
        %1090 = vmatpush1.bf16.msra.mxu0 0
        %1091 = vmatprep.subr.bf16.mxu0 0
        %1092 = vmatpush1.bf16.msra.mxu0 0
        %1093 = vmatprep.subr.bf16.mxu0 0
        %1094 = vmatpush1.bf16.msra.mxu0 0
        %1095 = vmatprep.subr.bf16.mxu0 0
        %1096 = vmatpush1.bf16.msra.mxu0 0
        %1097 = vmatprep.mubr.bf16.mxu0 0
        %1098 = vmatmul.mubr.bf16.gmra.mrb[0].mxu0 %v1054
        %v1099 = vpop.f32.mrb[0].mxu0
        %v1100 = vadd.f32 %v996, %v1099
        %v1101 = vpop.f32.mrb[0].mxu0
        %v1102 = vadd.f32 %v996, %v1101
        %v1103 = vpop.f32.mrb[0].mxu0
        %v1104 = vadd.f32 %v1001, %v1103
        %v1105 = vpop.f32.mrb[0].mxu0
        %v1106 = vadd.f32 %v1001, %v1105
        %1107 = vmatprep.mubr.bf16.mxu0 0
        %1108 = vmatmul.mubr.bf16.gmra.mrb[0].mxu0 %v1057
        %v1109 = vpop.f32.mrb[0].mxu0
        %v1110 = vadd.f32 %v1006, %v1109
        %v1111 = vpop.f32.mrb[0].mxu0
        %v1112 = vadd.f32 %v1006, %v1111
        %v1113 = vpop.f32.mrb[0].mxu0
        %v1114 = vadd.f32 %v1011, %v1113
        %v1115 = vpop.f32.mrb[0].mxu0
        %v1116 = vadd.f32 %v1011, %v1115
        %1117 = vmatprep.mubr.bf16.mxu0 0
        %1118 = vmatmul.mubr.bf16.gmra.mrb[0].mxu0 %v1060
        %v1119 = vpop.f32.mrb[0].mxu0
        %v1120 = vadd.f32 %v1016, %v1119
        %v1121 = vpop.f32.mrb[0].mxu0
        %v1122 = vadd.f32 %v1016, %v1121
        %v1123 = vpop.f32.mrb[0].mxu0
        %v1124 = vadd.f32 %v1021, %v1123
        %v1125 = vpop.f32.mrb[0].mxu0
        %v1126 = vadd.f32 %v1021, %v1125
        %1127 = vmatprep.mubr.bf16.mxu0 0
        %1128 = vmatmul.mubr.bf16.gmra.mrb[0].mxu0 %v1063
        %v1129 = vpop.f32.mrb[0].mxu0
        %v1130 = vadd.f32 %v1026, %v1129
        %v1131 = vpop.f32.mrb[0].mxu0
        %v1132 = vadd.f32 %v1026, %v1131
        %v1133 = vpop.f32.mrb[0].mxu0
        %v1134 = vadd.f32 %v1031, %v1133
        %v1135 = vpop.f32.mrb[0].mxu0
        %v1136 = vadd.f32 %v1031, %v1135
        %1137 = vdwg.mxu0
        %v1138 = vpack.c.bf16 %v1124, %v1120
        %v1139 = vpack.c.bf16 %v1126, %v1122
        %v1140 = vpack.c.bf16 %v1134, %v1130
        %v1141 = vpack.c.bf16 %v1136, %v1132
        %v1142 = vld [vmem:[%s8] sm:$0xff]
        %v1143 = vld [vmem:[%s8 + $0x8] sm:$0xff]
        %v1144 = vld [vmem:[%s8 + $0x10] sm:$0xff]
        %v1145 = vld [vmem:[%s8 + $0x18] sm:$0xff]
        %v1146 = vld [vmem:[%s7] sm:$0xff]
        %v1147 = vld [vmem:[%s7 + $0x8] sm:$0xff]
        %v1148 = vld [vmem:[%s7 + $0x10] sm:$0xff]
        %v1149 = vld [vmem:[%s7 + $0x18] sm:$0xff]
        %v1150 = vmul.f32 %v959, %v959
        %v1151 = vmul.f32 %v961, %v961
        %v1152 = vmul.f32 %v963, %v963
        %v1153 = vmul.f32 %v965, %v965
        %v1154 = vmul.f32 %v969, %v969
        %v1155 = vmul.f32 %v971, %v971
        %v1156 = vmul.f32 %v973, %v973
        %v1157 = vmul.f32 %v975, %v975
        %v1158 = vadd.f32 %v1150, %v1151
        %1159 = vadd.xlane.f32.xlu0 %v1158
        %v1160 = vpop.xlane.xlu0 %1159
        %v1161 = vadd.f32 %v1152, %v1153
        %1162 = vadd.xlane.f32.xlu0 %v1161
        %v1163 = vpop.xlane.xlu0 %1162
        %v1164 = vadd.f32 %v1154, %v1155
        %1165 = vadd.xlane.f32.xlu0 %v1164
        %v1166 = vpop.xlane.xlu0 %1165
        %v1167 = vadd.f32 %v1156, %v1157
        %1168 = vadd.xlane.f32.xlu0 %v1167
        %v1169 = vpop.xlane.xlu0 %1168
        %v1170 = vmax.f32 %v1160, 1e-24
        %v1171 = vmax.f32 %v1163, 1e-24
        %v1172 = vmax.f32 %v1166, 1e-24
        %v1173 = vmax.f32 %v1169, 1e-24
        %v1174 = vrsqrt.pop %v1170
        %v1175 = vrsqrt.pop %v1171
        %v1176 = vrsqrt.pop %v1172
        %v1177 = vrsqrt.pop %v1173
        %v1178 = vmul.f32 %v1174, %v1146
        %v1179 = vmul.f32 %v1175, %v1147
        %v1180 = vmul.f32 %v1176, %v1148
        %v1181 = vmul.f32 %v1177, %v1149
        %1183 = vset.pattern.permute.xlu0 0
        %1184 = vperm.xlu0 %1183, %v1178
        %v1185 = vpop.permute.xlu0 %1184
        %1188 = vset.pattern.permute.xlu0 0
        %1189 = vperm.xlu0 %1188, %v1179
        %v1190 = vpop.permute.xlu0 %1189
        %1193 = vset.pattern.permute.xlu0 0
        %1194 = vperm.xlu0 %1193, %v1180
        %v1195 = vpop.permute.xlu0 %1194
        %1198 = vset.pattern.permute.xlu0 0
        %1199 = vperm.xlu0 %1198, %v1181
        %v1200 = vpop.permute.xlu0 %1199
        %v1202 = vmul.f32 %v959, %v1185
        %v1203 = vmul.f32 %v961, %v1185
        %v1204 = vmul.f32 %v963, %v1190
        %v1205 = vmul.f32 %v965, %v1190
        %v1206 = vmul.f32 %v969, %v1195
        %v1207 = vmul.f32 %v971, %v1195
        %v1208 = vmul.f32 %v973, %v1200
        %v1209 = vmul.f32 %v975, %v1200
        %v1210 = vmul.f32 %v1100, %v1100
        %v1211 = vmul.f32 %v1102, %v1102
        %v1212 = vmul.f32 %v1104, %v1104
        %v1213 = vmul.f32 %v1106, %v1106
        %v1214 = vmul.f32 %v1110, %v1110
        %v1215 = vmul.f32 %v1112, %v1112
        %v1216 = vmul.f32 %v1114, %v1114
        %v1217 = vmul.f32 %v1116, %v1116
        %v1218 = vadd.f32 %v1210, %v1211
        %1219 = vadd.xlane.f32.xlu0 %v1218
        %v1220 = vpop.xlane.xlu0 %1219
        %v1221 = vadd.f32 %v1212, %v1213
        %1222 = vadd.xlane.f32.xlu0 %v1221
        %v1223 = vpop.xlane.xlu0 %1222
        %v1224 = vadd.f32 %v1214, %v1215
        %1225 = vadd.xlane.f32.xlu0 %v1224
        %v1226 = vpop.xlane.xlu0 %1225
        %v1227 = vadd.f32 %v1216, %v1217
        %1228 = vadd.xlane.f32.xlu0 %v1227
        %v1229 = vpop.xlane.xlu0 %1228
        %v1230 = vmax.f32 %v1220, 1e-24
        %v1231 = vmax.f32 %v1223, 1e-24
        %v1232 = vmax.f32 %v1226, 1e-24
        %v1233 = vmax.f32 %v1229, 1e-24
        %v1234 = vrsqrt.pop %v1230
        %v1235 = vrsqrt.pop %v1231
        %v1236 = vrsqrt.pop %v1232
        %v1237 = vrsqrt.pop %v1233
        %v1238 = vmul.f32 %v1100, %v1234
        %v1239 = vmul.f32 %v1102, %v1234
        %v1240 = vmul.f32 %v1104, %v1235
        %v1241 = vmul.f32 %v1106, %v1235
        %v1242 = vmul.f32 %v1110, %v1236
        %v1243 = vmul.f32 %v1112, %v1236
        %v1244 = vmul.f32 %v1114, %v1237
        %v1245 = vmul.f32 %v1116, %v1237
        %v1246 = vpack.c.bf16 %v1204, %v1202
        %v1247 = vpack.c.bf16 %v1205, %v1203
        %v1248 = vpack.c.bf16 %v1208, %v1206
        %v1249 = vpack.c.bf16 %v1209, %v1207
        %v1250 = vpack.c.bf16 %v1240, %v1238
        %v1251 = vpack.c.bf16 %v1241, %v1239
        %v1252 = vpack.c.bf16 %v1244, %v1242
        %v1253 = vpack.c.bf16 %v1245, %v1243
        %1254 = vmatprep.subr.bf16.mxu0 %v1251
        %1255 = vmatpush1.bf16.xpose.msra.mxu0 %v1250
        %1256 = vmatprep.subr.bf16.mxu0 %v1253
        %1257 = vmatpush1.bf16.xpose.msra.mxu0 %v1252
        %1258 = vmatprep.subr.bf16.mxu0 0
        %1259 = vmatpush1.bf16.xpose.msra.mxu0 0
        %1260 = vmatprep.subr.bf16.mxu0 0
        %1261 = vmatpush1.bf16.xpose.msra.mxu0 0
        %1262 = vmatprep.subr.bf16.mxu0 0
        %1263 = vmatpush1.bf16.xpose.msra.mxu0 0
        %1264 = vmatprep.subr.bf16.mxu0 0
        %1265 = vmatpush1.bf16.xpose.msra.mxu0 0
        %1266 = vmatprep.subr.bf16.mxu0 0
        %1267 = vmatpush1.bf16.xpose.msra.mxu0 0
        %1268 = vmatprep.subr.bf16.mxu0 0
        %1269 = vmatpush1.bf16.xpose.msra.mxu0 0
        %1270 = vmatprep.subr.bf16.mxu0 0
        %1271 = vmatpush1.bf16.xpose.msra.mxu0 0
        %1272 = vmatprep.subr.bf16.mxu0 0
        %1273 = vmatpush1.bf16.xpose.msra.mxu0 0
        %1274 = vmatprep.subr.bf16.mxu0 0
        %1275 = vmatpush1.bf16.xpose.msra.mxu0 0
        %1276 = vmatprep.subr.bf16.mxu0 0
        %1277 = vmatpush1.bf16.xpose.msra.mxu0 0
        %1278 = vmatprep.subr.bf16.mxu0 0
        %1279 = vmatpush1.bf16.xpose.msra.mxu0 0
        %1280 = vmatprep.subr.bf16.mxu0 0
        %1281 = vmatpush1.bf16.xpose.msra.mxu0 0
        %1282 = vmatprep.subr.bf16.mxu0 0
        %1283 = vmatpush1.bf16.xpose.msra.mxu0 0
        %1284 = vmatprep.subr.bf16.mxu0 0
        %1285 = vmatpush1.bf16.xpose.msra.mxu0 0
        %1286 = vmatprep.mubr.bf16.mxu0 %v1247
        %1287 = vmatmul.mubr.bf16.gmra.mrb[0].mxu0 %v1246
        %v1288 = vpop.f32.mrb[0].mxu0
        %v1289 = vadd.f32 %v1142, %v1288
        %v1290 = vpop.f32.mrb[0].mxu0
        %v1291 = vpop.f32.mrb[0].mxu0
        %v1292 = vadd.f32 %v1143, %v1291
        %v1293 = vpop.f32.mrb[0].mxu0
        %1294 = vmatprep.mubr.bf16.mxu0 %v1249
        %1295 = vmatmul.mubr.bf16.gmra.mrb[0].mxu0 %v1248
        %v1296 = vpop.f32.mrb[0].mxu0
        %v1297 = vadd.f32 %v1144, %v1296
        %v1298 = vpop.f32.mrb[0].mxu0
        %v1299 = vpop.f32.mrb[0].mxu0
        %v1300 = vadd.f32 %v1145, %v1299
        %v1301 = vpop.f32.mrb[0].mxu0
        %1302 = vdwg.mxu0
        %v1303 = vsel %vm496, %v1289, -inf
        %1304 = vmax.xlane.f32.xlu0 %v1303
        %v1305 = vpop.xlane.xlu0 %1304
        %v1306 = vsel %vm496, %v1292, -inf
        %1307 = vmax.xlane.f32.xlu0 %v1306
        %v1308 = vpop.xlane.xlu0 %1307
        %v1309 = vsel %vm496, %v1297, -inf
        %1310 = vmax.xlane.f32.xlu0 %v1309
        %v1311 = vpop.xlane.xlu0 %1310
        %v1312 = vsel %vm496, %v1300, -inf
        %1313 = vmax.xlane.f32.xlu0 %v1312
        %v1314 = vpop.xlane.xlu0 %1313
        %v1315 = vsub.f32 %v1289, %v1305
        %v1316 = vsub.f32 %v1292, %v1308
        %v1317 = vsub.f32 %v1297, %v1311
        %v1318 = vsub.f32 %v1300, %v1314
        %v1319 = vmul.f32 %v1315, 1.442695
        %v1320 = vpow.pop %v1319
        %v1321 = vmul.f32 %v1316, 1.442695
        %v1322 = vpow.pop %v1321
        %v1323 = vmul.f32 %v1317, 1.442695
        %v1324 = vpow.pop %v1323
        %v1325 = vmul.f32 %v1318, 1.442695
        %v1326 = vpow.pop %v1325
        %v1327 = vsel %vm496, %v1320, 0.0
        %1328 = vadd.xlane.f32.xlu0 %v1327
        %v1329 = vpop.xlane.xlu0 %1328
        %v1330 = vsel %vm496, %v1322, 0.0
        %1331 = vadd.xlane.f32.xlu0 %v1330
        %v1332 = vpop.xlane.xlu0 %1331
        %v1333 = vsel %vm496, %v1324, 0.0
        %1334 = vadd.xlane.f32.xlu0 %v1333
        %v1335 = vpop.xlane.xlu0 %1334
        %v1336 = vsel %vm496, %v1326, 0.0
        %1337 = vadd.xlane.f32.xlu0 %v1336
        %v1338 = vpop.xlane.xlu0 %1337
        %v1339 = vrcp.pop %v1329
        %v1340 = vrcp.pop %v1332
        %v1341 = vrcp.pop %v1335
        %v1342 = vrcp.pop %v1338
        %v1343 = vmul.f32 %v1320, %v1339
        %v1344 = vmul.f32 %v1322, %v1340
        %v1345 = vmul.f32 %v1324, %v1341
        %v1346 = vmul.f32 %v1326, %v1342
        %v1347 = vpack.c.bf16 %v1344, %v1343
        %v1348 = vpack.c.bf16 %v1346, %v1345
        %v1350 = vsel %vm496, %v1347, 0
        %v1353 = vsel %vm496, %v1348, 0
        %1355 = vmatprep.subr.bf16.mxu0 %v1139
        %1356 = vmatpush1.bf16.msra.mxu0 %v1138
        %1357 = vmatprep.subr.bf16.mxu0 %v1141
        %1358 = vmatpush1.bf16.msra.mxu0 %v1140
        %1359 = vmatprep.subr.bf16.mxu0 0
        %1360 = vmatpush1.bf16.msra.mxu0 0
        %1361 = vmatprep.subr.bf16.mxu0 0
        %1362 = vmatpush1.bf16.msra.mxu0 0
        %1363 = vmatprep.subr.bf16.mxu0 0
        %1364 = vmatpush1.bf16.msra.mxu0 0
        %1365 = vmatprep.subr.bf16.mxu0 0
        %1366 = vmatpush1.bf16.msra.mxu0 0
        %1367 = vmatprep.subr.bf16.mxu0 0
        %1368 = vmatpush1.bf16.msra.mxu0 0
        %1369 = vmatprep.subr.bf16.mxu0 0
        %1370 = vmatpush1.bf16.msra.mxu0 0
        %1371 = vmatprep.subr.bf16.mxu0 0
        %1372 = vmatpush1.bf16.msra.mxu0 0
        %1373 = vmatprep.subr.bf16.mxu0 0
        %1374 = vmatpush1.bf16.msra.mxu0 0
        %1375 = vmatprep.subr.bf16.mxu0 0
        %1376 = vmatpush1.bf16.msra.mxu0 0
        %1377 = vmatprep.subr.bf16.mxu0 0
        %1378 = vmatpush1.bf16.msra.mxu0 0
        %1379 = vmatprep.subr.bf16.mxu0 0
        %1380 = vmatpush1.bf16.msra.mxu0 0
        %1381 = vmatprep.subr.bf16.mxu0 0
        %1382 = vmatpush1.bf16.msra.mxu0 0
        %1383 = vmatprep.subr.bf16.mxu0 0
        %1384 = vmatpush1.bf16.msra.mxu0 0
        %1385 = vmatprep.subr.bf16.mxu0 0
        %1386 = vmatpush1.bf16.msra.mxu0 0
        %1387 = vmatprep.mubr.bf16.mxu0 0
        %1388 = vmatmul.mubr.bf16.gmra.mrb[0].mxu0 %v1350
        %v1389 = vpop.f32.mrb[0].mxu0
        %v1390 = vadd.f32 0.0, %v1389
        %v1391 = vpop.f32.mrb[0].mxu0
        %v1392 = vadd.f32 0.0, %v1391
        %v1393 = vpop.f32.mrb[0].mxu0
        %v1394 = vadd.f32 0.0, %v1393
        %v1395 = vpop.f32.mrb[0].mxu0
        %v1396 = vadd.f32 0.0, %v1395
        %1397 = vmatprep.mubr.bf16.mxu0 0
        %1398 = vmatmul.mubr.bf16.gmra.mrb[0].mxu0 %v1353
        %v1399 = vpop.f32.mrb[0].mxu0
        %v1400 = vadd.f32 0.0, %v1399
        %v1401 = vpop.f32.mrb[0].mxu0
        %v1402 = vadd.f32 0.0, %v1401
        %v1403 = vpop.f32.mrb[0].mxu0
        %v1404 = vadd.f32 0.0, %v1403
        %v1405 = vpop.f32.mrb[0].mxu0
        %v1406 = vadd.f32 0.0, %v1405
        %1407 = vdwg.mxu0
        %v1408 = vpack.c.bf16 %v1394, %v1390
        %v1409 = vpack.c.bf16 %v1396, %v1392
        %v1410 = vpack.c.bf16 %v1404, %v1400
        %v1411 = vpack.c.bf16 %v1406, %v1402
        %v1412 = vld [vmem:[%s6] sm:$0xf]
        %v1413 = vld [vmem:[%s6 + $0x4] sm:$0xf]
        %v1414 = vld [vmem:[%s6 + $0x8] sm:$0xf]
        %v1415 = vld [vmem:[%s6 + $0xc] sm:$0xf]
        %v1420 = vunpack.c.l.b16 %v1412
        %v1421 = vunpack.c.l.b16 %v1413
        %v1422 = vunpack.c.l.b16 %v1414
        %v1423 = vunpack.c.l.b16 %v1415
        %v1424 = vpack.c.b16 %v1421, %v1420
        %v1425 = vpack.c.b16 %v1423, %v1422
        %v1427 = vsel %vm496, %v1424, 0
        %v1430 = vsel %vm496, %v1425, 0
        %1432 = vmatprep.subr.bf16.mxu0 %v1409
        %1433 = vmatpush1.bf16.msra.mxu0 %v1408
        %1434 = vmatprep.subr.bf16.mxu0 %v1411
        %1435 = vmatpush1.bf16.msra.mxu0 %v1410
        %1436 = vmatprep.subr.bf16.mxu0 0
        %1437 = vmatpush1.bf16.msra.mxu0 0
        %1438 = vmatprep.subr.bf16.mxu0 0
        %1439 = vmatpush1.bf16.msra.mxu0 0
        %1440 = vmatprep.subr.bf16.mxu0 0
        %1441 = vmatpush1.bf16.msra.mxu0 0
        %1442 = vmatprep.subr.bf16.mxu0 0
        %1443 = vmatpush1.bf16.msra.mxu0 0
        %1444 = vmatprep.subr.bf16.mxu0 0
        %1445 = vmatpush1.bf16.msra.mxu0 0
        %1446 = vmatprep.subr.bf16.mxu0 0
        %1447 = vmatpush1.bf16.msra.mxu0 0
        %1448 = vmatprep.subr.bf16.mxu0 0
        %1449 = vmatpush1.bf16.msra.mxu0 0
        %1450 = vmatprep.subr.bf16.mxu0 0
        %1451 = vmatpush1.bf16.msra.mxu0 0
        %1452 = vmatprep.subr.bf16.mxu0 0
        %1453 = vmatpush1.bf16.msra.mxu0 0
        %1454 = vmatprep.subr.bf16.mxu0 0
        %1455 = vmatpush1.bf16.msra.mxu0 0
        %1456 = vmatprep.subr.bf16.mxu0 0
        %1457 = vmatpush1.bf16.msra.mxu0 0
        %1458 = vmatprep.subr.bf16.mxu0 0
        %1459 = vmatpush1.bf16.msra.mxu0 0
        %1460 = vmatprep.subr.bf16.mxu0 0
        %1461 = vmatpush1.bf16.msra.mxu0 0
        %1462 = vmatprep.subr.bf16.mxu0 0
        %1463 = vmatpush1.bf16.msra.mxu0 0
        %1464 = vmatprep.mubr.bf16.mxu0 0
        %1465 = vmatmul.mubr.bf16.gmra.mrb[0].mxu0 %v1427
        %v1466 = vpop.f32.mrb[0].mxu0
        %v1467 = vadd.f32 0.0, %v1466
        %v1468 = vpop.f32.mrb[0].mxu0
        %v1469 = vadd.f32 0.0, %v1468
        %v1470 = vpop.f32.mrb[0].mxu0
        %v1471 = vadd.f32 0.0, %v1470
        %v1472 = vpop.f32.mrb[0].mxu0
        %v1473 = vadd.f32 0.0, %v1472
        %1474 = vmatprep.mubr.bf16.mxu0 0
        %1475 = vmatmul.mubr.bf16.gmra.mrb[0].mxu0 %v1430
        %v1476 = vpop.f32.mrb[0].mxu0
        %v1477 = vadd.f32 0.0, %v1476
        %v1478 = vpop.f32.mrb[0].mxu0
        %v1479 = vadd.f32 0.0, %v1478
        %v1480 = vpop.f32.mrb[0].mxu0
        %v1481 = vadd.f32 0.0, %v1480
        %v1482 = vpop.f32.mrb[0].mxu0
        %v1483 = vadd.f32 0.0, %v1482
        %1484 = vdwg.mxu0
        %v1485 = vadd.f32 %v480, %v1467
        %v1486 = vadd.f32 %v481, %v1469
        %v1487 = vadd.f32 %v482, %v1471
        %v1488 = vadd.f32 %v483, %v1473
        %v1489 = vadd.f32 %v484, %v1477
        %v1490 = vadd.f32 %v485, %v1479
        %v1491 = vadd.f32 %v486, %v1481
        %v1492 = vadd.f32 %v487, %v1483
        %1493 = vmatprep.subr.mxu0 %v1486
        %1494 = vmatpush1.msra.mxu0 %v1485
        %1495 = vmatprep.subr.mxu0 %v1488
        %1496 = vmatpush1.msra.mxu0 %v1487
        %1497 = vmatprep.subr.mxu0 %v1490
        %1498 = vmatpush1.msra.mxu0 %v1489
        %1499 = vmatprep.subr.mxu0 %v1492
        %1500 = vmatpush1.msra.mxu0 %v1491
        %1501 = vmatprep.subr.mxu0 0.0
        %1502 = vmatpush1.msra.mxu0 0.0
        %1503 = vmatprep.subr.mxu0 0.0
        %1504 = vmatpush1.msra.mxu0 0.0
        %1505 = vmatprep.subr.mxu0 0.0
        %1506 = vmatpush1.msra.mxu0 0.0
        %1507 = vmatprep.subr.mxu0 0.0
        %1508 = vmatpush1.msra.mxu0 0.0
        %1509 = vmatprep.subr.mxu0 0.0
        %1510 = vmatpush1.msra.mxu0 0.0
        %1511 = vmatprep.subr.mxu0 0.0
        %1512 = vmatpush1.msra.mxu0 0.0
        %1513 = vmatprep.subr.mxu0 0.0
        %1514 = vmatpush1.msra.mxu0 0.0
        %1515 = vmatprep.subr.mxu0 0.0
        %1516 = vmatpush1.msra.mxu0 0.0
        %1517 = vmatprep.subr.mxu0 0.0
        %1518 = vmatpush1.msra.mxu0 0.0
        %1519 = vmatprep.subr.mxu0 0.0
        %1520 = vmatpush1.msra.mxu0 0.0
        %1521 = vmatprep.subr.mxu0 0.0
        %1522 = vmatpush1.msra.mxu0 0.0
        %1523 = vmatprep.subr.mxu0 0.0
        %1524 = vmatpush1.msra.mxu0 0.0
        %1525 = vmatprep.subr.mxu0 0.0
        %1526 = vmatpush1.msra.mxu0 0.0
        %1527 = vmatprep.subr.mxu0 0.0
        %1528 = vmatpush1.msra.mxu0 0.0
        %1529 = vmatprep.subr.mxu0 0.0
        %1530 = vmatpush1.msra.mxu0 0.0
        %1531 = vmatprep.subr.mxu0 0.0
        %1532 = vmatpush1.msra.mxu0 0.0
        %1533 = vmatprep.subr.mxu0 0.0
        %1534 = vmatpush1.msra.mxu0 0.0
        %1535 = vmatprep.subr.mxu0 0.0
        %1536 = vmatpush1.msra.mxu0 0.0
        %1537 = vmatprep.subr.mxu0 0.0
        %1538 = vmatpush1.msra.mxu0 0.0
        %1539 = vmatprep.subr.mxu0 0.0
        %1540 = vmatpush1.msra.mxu0 0.0
        %1541 = vmatprep.subr.mxu0 0.0
        %1542 = vmatpush1.msra.mxu0 0.0
        %1543 = vmatprep.subr.mxu0 0.0
        %1544 = vmatpush1.msra.mxu0 0.0
        %1545 = vmatprep.subr.mxu0 0.0
        %1546 = vmatpush1.msra.mxu0 0.0
        %1547 = vmatprep.subr.mxu0 0.0
        %1548 = vmatpush1.msra.mxu0 0.0
        %1549 = vmatprep.subr.mxu0 0.0
        %1550 = vmatpush1.msra.mxu0 0.0
        %1551 = vmatprep.subr.mxu0 0.0
        %1552 = vmatpush1.msra.mxu0 0.0
        %1553 = vmatprep.subr.mxu0 0.0
        %1554 = vmatpush1.msra.mxu0 0.0
        %1555 = vmatprep.subr.mxu0 0.0
        %1556 = vmatpush1.msra.mxu0 0.0
        %1557 = vmatprep.mubr.f32.mxu0 0.0
        %1558 = vmatmul.mubr.f32.gmra.mrb[0].mxu0 %v498
        %v1559 = vpop.f32.mrb[0].mxu0
        %v1560 = vadd.f32 0.0, %v1559
        %v1561 = vpop.f32.mrb[0].mxu0
        %v1562 = vadd.f32 0.0, %v1561
        %1563 = vdwg.mxu0
        %v1564 = vlaneseq
        %v1565 = vshrl.u32 %v1564, 7
        %v1566 = vsub.s32 0, %v1565
        %v1567 = vrot.slane %v1560, %v1566
        %v1568 = vlaneseq
        %v1569 = vshrl.u32 %v1568, 7
        %v1570 = vsub.s32 0, %v1569
        %v1571 = vrot.slane %v1562, %v1570
        %v1572 = vsub.f32 %v1485, %v1567
        %v1573 = vsub.f32 %v1486, %v1571
        %v1574 = vsub.f32 %v1487, %v1567
        %v1575 = vsub.f32 %v1488, %v1571
        %v1576 = vsub.f32 %v1489, %v1567
        %v1577 = vsub.f32 %v1490, %v1571
        %v1578 = vsub.f32 %v1491, %v1567
        %v1579 = vsub.f32 %v1492, %v1571
        %v1580 = vmul.f32 %v1572, %v1572
        %v1581 = vmul.f32 %v1573, %v1573
        %v1582 = vmul.f32 %v1574, %v1574
        %v1583 = vmul.f32 %v1575, %v1575
        %v1584 = vmul.f32 %v1576, %v1576
        %v1585 = vmul.f32 %v1577, %v1577
        %v1586 = vmul.f32 %v1578, %v1578
        %v1587 = vmul.f32 %v1579, %v1579
        %1588 = vmatprep.subr.mxu0 %v1581
        %1589 = vmatpush1.msra.mxu0 %v1580
        %1590 = vmatprep.subr.mxu0 %v1583
        %1591 = vmatpush1.msra.mxu0 %v1582
        %1592 = vmatprep.subr.mxu0 %v1585
        %1593 = vmatpush1.msra.mxu0 %v1584
        %1594 = vmatprep.subr.mxu0 %v1587
        %1595 = vmatpush1.msra.mxu0 %v1586
        %1596 = vmatprep.subr.mxu0 0.0
        %1597 = vmatpush1.msra.mxu0 0.0
        %1598 = vmatprep.subr.mxu0 0.0
        %1599 = vmatpush1.msra.mxu0 0.0
        %1600 = vmatprep.subr.mxu0 0.0
        %1601 = vmatpush1.msra.mxu0 0.0
        %1602 = vmatprep.subr.mxu0 0.0
        %1603 = vmatpush1.msra.mxu0 0.0
        %1604 = vmatprep.subr.mxu0 0.0
        %1605 = vmatpush1.msra.mxu0 0.0
        %1606 = vmatprep.subr.mxu0 0.0
        %1607 = vmatpush1.msra.mxu0 0.0
        %1608 = vmatprep.subr.mxu0 0.0
        %1609 = vmatpush1.msra.mxu0 0.0
        %1610 = vmatprep.subr.mxu0 0.0
        %1611 = vmatpush1.msra.mxu0 0.0
        %1612 = vmatprep.subr.mxu0 0.0
        %1613 = vmatpush1.msra.mxu0 0.0
        %1614 = vmatprep.subr.mxu0 0.0
        %1615 = vmatpush1.msra.mxu0 0.0
        %1616 = vmatprep.subr.mxu0 0.0
        %1617 = vmatpush1.msra.mxu0 0.0
        %1618 = vmatprep.subr.mxu0 0.0
        %1619 = vmatpush1.msra.mxu0 0.0
        %1620 = vmatprep.subr.mxu0 0.0
        %1621 = vmatpush1.msra.mxu0 0.0
        %1622 = vmatprep.subr.mxu0 0.0
        %1623 = vmatpush1.msra.mxu0 0.0
        %1624 = vmatprep.subr.mxu0 0.0
        %1625 = vmatpush1.msra.mxu0 0.0
        %1626 = vmatprep.subr.mxu0 0.0
        %1627 = vmatpush1.msra.mxu0 0.0
        %1628 = vmatprep.subr.mxu0 0.0
        %1629 = vmatpush1.msra.mxu0 0.0
        %1630 = vmatprep.subr.mxu0 0.0
        %1631 = vmatpush1.msra.mxu0 0.0
        %1632 = vmatprep.subr.mxu0 0.0
        %1633 = vmatpush1.msra.mxu0 0.0
        %1634 = vmatprep.subr.mxu0 0.0
        %1635 = vmatpush1.msra.mxu0 0.0
        %1636 = vmatprep.subr.mxu0 0.0
        %1637 = vmatpush1.msra.mxu0 0.0
        %1638 = vmatprep.subr.mxu0 0.0
        %1639 = vmatpush1.msra.mxu0 0.0
        %1640 = vmatprep.subr.mxu0 0.0
        %1641 = vmatpush1.msra.mxu0 0.0
        %1642 = vmatprep.subr.mxu0 0.0
        %1643 = vmatpush1.msra.mxu0 0.0
        %1644 = vmatprep.subr.mxu0 0.0
        %1645 = vmatpush1.msra.mxu0 0.0
        %1646 = vmatprep.subr.mxu0 0.0
        %1647 = vmatpush1.msra.mxu0 0.0
        %1648 = vmatprep.subr.mxu0 0.0
        %1649 = vmatpush1.msra.mxu0 0.0
        %1650 = vmatprep.subr.mxu0 0.0
        %1651 = vmatpush1.msra.mxu0 0.0
        %1652 = vmatprep.mubr.f32.mxu0 0.0
        %1653 = vmatmul.mubr.f32.gmra.mrb[0].mxu0 %v498
        %v1654 = vpop.f32.mrb[0].mxu0
        %v1655 = vadd.f32 0.0, %v1654
        %v1656 = vpop.f32.mrb[0].mxu0
        %v1657 = vadd.f32 0.0, %v1656
        %1658 = vdwg.mxu0
        %v1659 = vadd.f32 %v1655, 1e-05
        %v1660 = vadd.f32 %v1657, 1e-05
        %v1661 = vrsqrt.pop %v1659
        %v1662 = vrsqrt.pop %v1660
        %v1663 = vlaneseq
        %v1664 = vshrl.u32 %v1663, 7
        %v1665 = vsub.s32 0, %v1664
        %v1666 = vrot.slane %v1661, %v1665
        %v1667 = vlaneseq
        %v1668 = vshrl.u32 %v1667, 7
        %v1669 = vsub.s32 0, %v1668
        %v1670 = vrot.slane %v1662, %v1669
        %v1671 = vmul.f32 %v1572, %v1666
        %v1672 = vmul.f32 %v1573, %v1670
        %v1673 = vmul.f32 %v1574, %v1666
        %v1674 = vmul.f32 %v1575, %v1670
        %v1675 = vmul.f32 %v1576, %v1666
        %v1676 = vmul.f32 %v1577, %v1670
        %v1677 = vmul.f32 %v1578, %v1666
        %v1678 = vmul.f32 %v1579, %v1670
        %v1679 = vpack.c.bf16 %v1673, %v1671
        %v1680 = vpack.c.bf16 %v1674, %v1672
        %v1681 = vpack.c.bf16 %v1677, %v1675
        %v1682 = vpack.c.bf16 %v1678, %v1676
        %v1683 = vld [vmem:[%s9] sm:$0xf]
        %v1684 = vld [vmem:[%s9 + $0x4] sm:$0xf]
        %v1685 = vld [vmem:[%s9 + $0x8] sm:$0xf]
        %v1686 = vld [vmem:[%s9 + $0xc] sm:$0xf]
        %v1687 = vld [vmem:[%s9 + $0x10] sm:$0xf]
        %v1688 = vld [vmem:[%s9 + $0x14] sm:$0xf]
        %v1689 = vld [vmem:[%s9 + $0x18] sm:$0xf]
        %v1690 = vld [vmem:[%s9 + $0x1c] sm:$0xf]
        %v1691 = vld [vmem:[%s10] sm:$0xff]
        %v1692 = vld [vmem:[%s10 + $0x8] sm:$0xff]
        %v1693 = vld [vmem:[%s10 + $0x10] sm:$0xff]
        %v1694 = vld [vmem:[%s10 + $0x18] sm:$0xff]
        %v1695 = vld [vmem:[%s10 + $0x20] sm:$0xff]
        %v1696 = vld [vmem:[%s10 + $0x28] sm:$0xff]
        %v1697 = vld [vmem:[%s10 + $0x30] sm:$0xff]
        %v1698 = vld [vmem:[%s10 + $0x38] sm:$0xff]
        %1700 = vset.pattern.permute.xlu0 0
        %1701 = vperm.xlu0 %1700, %v1691
        %v1702 = vpop.permute.xlu0 %1701
        %1705 = vset.pattern.permute.xlu0 0
        %1706 = vperm.xlu0 %1705, %v1692
        %v1707 = vpop.permute.xlu0 %1706
        %1710 = vset.pattern.permute.xlu0 0
        %1711 = vperm.xlu0 %1710, %v1693
        %v1712 = vpop.permute.xlu0 %1711
        %1715 = vset.pattern.permute.xlu0 0
        %1716 = vperm.xlu0 %1715, %v1694
        %v1717 = vpop.permute.xlu0 %1716
        %1720 = vset.pattern.permute.xlu0 0
        %1721 = vperm.xlu0 %1720, %v1695
        %v1722 = vpop.permute.xlu0 %1721
        %1725 = vset.pattern.permute.xlu0 0
        %1726 = vperm.xlu0 %1725, %v1696
        %v1727 = vpop.permute.xlu0 %1726
        %1730 = vset.pattern.permute.xlu0 0
        %1731 = vperm.xlu0 %1730, %v1697
        %v1732 = vpop.permute.xlu0 %1731
        %1735 = vset.pattern.permute.xlu0 0
        %1736 = vperm.xlu0 %1735, %v1698
        %v1737 = vpop.permute.xlu0 %1736
        %v1747 = vunpack.c.l.b16 %v1683
        %v1748 = vunpack.c.l.b16 %v1684
        %v1749 = vunpack.c.l.b16 %v1685
        %v1750 = vunpack.c.l.b16 %v1686
        %v1751 = vunpack.c.l.b16 %v1687
        %v1752 = vunpack.c.l.b16 %v1688
        %v1753 = vunpack.c.l.b16 %v1689
        %v1754 = vunpack.c.l.b16 %v1690
        %v1755 = vpack.c.b16 %v1748, %v1747
        %v1756 = vpack.c.b16 %v1750, %v1749
        %v1757 = vpack.c.b16 %v1752, %v1751
        %v1758 = vpack.c.b16 %v1754, %v1753
        %v1760 = vsel %vm496, %v1755, 0
        %v1763 = vsel %vm496, %v1756, 0
        %v1766 = vsel %vm496, %v1757, 0
        %v1769 = vsel %vm496, %v1758, 0
        %1771 = vmatprep.subr.bf16.mxu0 %v1680
        %1772 = vmatpush1.bf16.msra.mxu0 %v1679
        %1773 = vmatprep.subr.bf16.mxu0 %v1682
        %1774 = vmatpush1.bf16.msra.mxu0 %v1681
        %1775 = vmatprep.subr.bf16.mxu0 0
        %1776 = vmatpush1.bf16.msra.mxu0 0
        %1777 = vmatprep.subr.bf16.mxu0 0
        %1778 = vmatpush1.bf16.msra.mxu0 0
        %1779 = vmatprep.subr.bf16.mxu0 0
        %1780 = vmatpush1.bf16.msra.mxu0 0
        %1781 = vmatprep.subr.bf16.mxu0 0
        %1782 = vmatpush1.bf16.msra.mxu0 0
        %1783 = vmatprep.subr.bf16.mxu0 0
        %1784 = vmatpush1.bf16.msra.mxu0 0
        %1785 = vmatprep.subr.bf16.mxu0 0
        %1786 = vmatpush1.bf16.msra.mxu0 0
        %1787 = vmatprep.subr.bf16.mxu0 0
        %1788 = vmatpush1.bf16.msra.mxu0 0
        %1789 = vmatprep.subr.bf16.mxu0 0
        %1790 = vmatpush1.bf16.msra.mxu0 0
        %1791 = vmatprep.subr.bf16.mxu0 0
        %1792 = vmatpush1.bf16.msra.mxu0 0
        %1793 = vmatprep.subr.bf16.mxu0 0
        %1794 = vmatpush1.bf16.msra.mxu0 0
        %1795 = vmatprep.subr.bf16.mxu0 0
        %1796 = vmatpush1.bf16.msra.mxu0 0
        %1797 = vmatprep.subr.bf16.mxu0 0
        %1798 = vmatpush1.bf16.msra.mxu0 0
        %1799 = vmatprep.subr.bf16.mxu0 0
        %1800 = vmatpush1.bf16.msra.mxu0 0
        %1801 = vmatprep.subr.bf16.mxu0 0
        %1802 = vmatpush1.bf16.msra.mxu0 0
        %1803 = vmatprep.mubr.bf16.mxu0 0
        %1804 = vmatmul.mubr.bf16.gmra.mrb[0].mxu0 %v1760
        %v1805 = vpop.f32.mrb[0].mxu0
        %v1806 = vadd.f32 %v1702, %v1805
        %v1807 = vpop.f32.mrb[0].mxu0
        %v1808 = vadd.f32 %v1702, %v1807
        %v1809 = vpop.f32.mrb[0].mxu0
        %v1810 = vadd.f32 %v1707, %v1809
        %v1811 = vpop.f32.mrb[0].mxu0
        %v1812 = vadd.f32 %v1707, %v1811
        %1813 = vmatprep.mubr.bf16.mxu0 0
        %1814 = vmatmul.mubr.bf16.gmra.mrb[0].mxu0 %v1763
        %v1815 = vpop.f32.mrb[0].mxu0
        %v1816 = vadd.f32 %v1712, %v1815
        %v1817 = vpop.f32.mrb[0].mxu0
        %v1818 = vadd.f32 %v1712, %v1817
        %v1819 = vpop.f32.mrb[0].mxu0
        %v1820 = vadd.f32 %v1717, %v1819
        %v1821 = vpop.f32.mrb[0].mxu0
        %v1822 = vadd.f32 %v1717, %v1821
        %1823 = vmatprep.mubr.bf16.mxu0 0
        %1824 = vmatmul.mubr.bf16.gmra.mrb[0].mxu0 %v1766
        %v1825 = vpop.f32.mrb[0].mxu0
        %v1826 = vadd.f32 %v1722, %v1825
        %v1827 = vpop.f32.mrb[0].mxu0
        %v1828 = vadd.f32 %v1722, %v1827
        %v1829 = vpop.f32.mrb[0].mxu0
        %v1830 = vadd.f32 %v1727, %v1829
        %v1831 = vpop.f32.mrb[0].mxu0
        %v1832 = vadd.f32 %v1727, %v1831
        %1833 = vmatprep.mubr.bf16.mxu0 0
        %1834 = vmatmul.mubr.bf16.gmra.mrb[0].mxu0 %v1769
        %v1835 = vpop.f32.mrb[0].mxu0
        %v1836 = vadd.f32 %v1732, %v1835
        %v1837 = vpop.f32.mrb[0].mxu0
        %v1838 = vadd.f32 %v1732, %v1837
        %v1839 = vpop.f32.mrb[0].mxu0
        %v1840 = vadd.f32 %v1737, %v1839
        %v1841 = vpop.f32.mrb[0].mxu0
        %v1842 = vadd.f32 %v1737, %v1841
        %1843 = vdwg.mxu0
        %v1844 = vmul.f32 %v1806, 0.5
        %v1845 = vmul.f32 %v1808, 0.5
        %v1846 = vmul.f32 %v1810, 0.5
        %v1847 = vmul.f32 %v1812, 0.5
        %v1848 = vmul.f32 %v1816, 0.5
        %v1849 = vmul.f32 %v1818, 0.5
        %v1850 = vmul.f32 %v1820, 0.5
        %v1851 = vmul.f32 %v1822, 0.5
        %v1852 = vmul.f32 %v1826, 0.5
        %v1853 = vmul.f32 %v1828, 0.5
        %v1854 = vmul.f32 %v1830, 0.5
        %v1855 = vmul.f32 %v1832, 0.5
        %v1856 = vmul.f32 %v1836, 0.5
        %v1857 = vmul.f32 %v1838, 0.5
        %v1858 = vmul.f32 %v1840, 0.5
        %v1859 = vmul.f32 %v1842, 0.5
        %v1860 = vmul.f32 %v1806, 0.044715
        %v1861 = vmul.f32 %v1808, 0.044715
        %v1862 = vmul.f32 %v1810, 0.044715
        %v1863 = vmul.f32 %v1812, 0.044715
        %v1864 = vmul.f32 %v1816, 0.044715
        %v1865 = vmul.f32 %v1818, 0.044715
        %v1866 = vmul.f32 %v1820, 0.044715
        %v1867 = vmul.f32 %v1822, 0.044715
        %v1868 = vmul.f32 %v1826, 0.044715
        %v1869 = vmul.f32 %v1828, 0.044715
        %v1870 = vmul.f32 %v1830, 0.044715
        %v1871 = vmul.f32 %v1832, 0.044715
        %v1872 = vmul.f32 %v1836, 0.044715
        %v1873 = vmul.f32 %v1838, 0.044715
        %v1874 = vmul.f32 %v1840, 0.044715
        %v1875 = vmul.f32 %v1842, 0.044715
        %v1876 = vmul.f32 %v1860, %v1806
        %v1877 = vmul.f32 %v1861, %v1808
        %v1878 = vmul.f32 %v1862, %v1810
        %v1879 = vmul.f32 %v1863, %v1812
        %v1880 = vmul.f32 %v1864, %v1816
        %v1881 = vmul.f32 %v1865, %v1818
        %v1882 = vmul.f32 %v1866, %v1820
        %v1883 = vmul.f32 %v1867, %v1822
        %v1884 = vmul.f32 %v1868, %v1826
        %v1885 = vmul.f32 %v1869, %v1828
        %v1886 = vmul.f32 %v1870, %v1830
        %v1887 = vmul.f32 %v1871, %v1832
        %v1888 = vmul.f32 %v1872, %v1836
        %v1889 = vmul.f32 %v1873, %v1838
        %v1890 = vmul.f32 %v1874, %v1840
        %v1891 = vmul.f32 %v1875, %v1842
        %v1892 = vmul.f32 %v1876, %v1806
        %v1893 = vmul.f32 %v1877, %v1808
        %v1894 = vmul.f32 %v1878, %v1810
        %v1895 = vmul.f32 %v1879, %v1812
        %v1896 = vmul.f32 %v1880, %v1816
        %v1897 = vmul.f32 %v1881, %v1818
        %v1898 = vmul.f32 %v1882, %v1820
        %v1899 = vmul.f32 %v1883, %v1822
        %v1900 = vmul.f32 %v1884, %v1826
        %v1901 = vmul.f32 %v1885, %v1828
        %v1902 = vmul.f32 %v1886, %v1830
        %v1903 = vmul.f32 %v1887, %v1832
        %v1904 = vmul.f32 %v1888, %v1836
        %v1905 = vmul.f32 %v1889, %v1838
        %v1906 = vmul.f32 %v1890, %v1840
        %v1907 = vmul.f32 %v1891, %v1842
        %v1908 = vadd.f32 %v1806, %v1892
        %v1909 = vadd.f32 %v1808, %v1893
        %v1910 = vadd.f32 %v1810, %v1894
        %v1911 = vadd.f32 %v1812, %v1895
        %v1912 = vadd.f32 %v1816, %v1896
        %v1913 = vadd.f32 %v1818, %v1897
        %v1914 = vadd.f32 %v1820, %v1898
        %v1915 = vadd.f32 %v1822, %v1899
        %v1916 = vadd.f32 %v1826, %v1900
        %v1917 = vadd.f32 %v1828, %v1901
        %v1918 = vadd.f32 %v1830, %v1902
        %v1919 = vadd.f32 %v1832, %v1903
        %v1920 = vadd.f32 %v1836, %v1904
        %v1921 = vadd.f32 %v1838, %v1905
        %v1922 = vadd.f32 %v1840, %v1906
        %v1923 = vadd.f32 %v1842, %v1907
        %v1924 = vmul.f32 %v1908, 0.7978846
        %v1925 = vmul.f32 %v1909, 0.7978846
        %v1926 = vmul.f32 %v1910, 0.7978846
        %v1927 = vmul.f32 %v1911, 0.7978846
        %v1928 = vmul.f32 %v1912, 0.7978846
        %v1929 = vmul.f32 %v1913, 0.7978846
        %v1930 = vmul.f32 %v1914, 0.7978846
        %v1931 = vmul.f32 %v1915, 0.7978846
        %v1932 = vmul.f32 %v1916, 0.7978846
        %v1933 = vmul.f32 %v1917, 0.7978846
        %v1934 = vmul.f32 %v1918, 0.7978846
        %v1935 = vmul.f32 %v1919, 0.7978846
        %v1936 = vmul.f32 %v1920, 0.7978846
        %v1937 = vmul.f32 %v1921, 0.7978846
        %v1938 = vmul.f32 %v1922, 0.7978846
        %v1939 = vmul.f32 %v1923, 0.7978846
        %v1940 = vtanh.pop %v1924
        %v1941 = vtanh.pop %v1925
        %v1942 = vtanh.pop %v1926
        %v1943 = vtanh.pop %v1927
        %v1944 = vtanh.pop %v1928
        %v1945 = vtanh.pop %v1929
        %v1946 = vtanh.pop %v1930
        %v1947 = vtanh.pop %v1931
        %v1948 = vtanh.pop %v1932
        %v1949 = vtanh.pop %v1933
        %v1950 = vtanh.pop %v1934
        %v1951 = vtanh.pop %v1935
        %v1952 = vtanh.pop %v1936
        %v1953 = vtanh.pop %v1937
        %v1954 = vtanh.pop %v1938
        %v1955 = vtanh.pop %v1939
        %v1956 = vadd.f32 %v1940, 1.0
        %v1957 = vadd.f32 %v1941, 1.0
        %v1958 = vadd.f32 %v1942, 1.0
        %v1959 = vadd.f32 %v1943, 1.0
        %v1960 = vadd.f32 %v1944, 1.0
        %v1961 = vadd.f32 %v1945, 1.0
        %v1962 = vadd.f32 %v1946, 1.0
        %v1963 = vadd.f32 %v1947, 1.0
        %v1964 = vadd.f32 %v1948, 1.0
        %v1965 = vadd.f32 %v1949, 1.0
        %v1966 = vadd.f32 %v1950, 1.0
        %v1967 = vadd.f32 %v1951, 1.0
        %v1968 = vadd.f32 %v1952, 1.0
        %v1969 = vadd.f32 %v1953, 1.0
        %v1970 = vadd.f32 %v1954, 1.0
        %v1971 = vadd.f32 %v1955, 1.0
        %v1972 = vmul.f32 %v1844, %v1956
        %v1973 = vmul.f32 %v1845, %v1957
        %v1974 = vmul.f32 %v1846, %v1958
        %v1975 = vmul.f32 %v1847, %v1959
        %v1976 = vmul.f32 %v1848, %v1960
        %v1977 = vmul.f32 %v1849, %v1961
        %v1978 = vmul.f32 %v1850, %v1962
        %v1979 = vmul.f32 %v1851, %v1963
        %v1980 = vmul.f32 %v1852, %v1964
        %v1981 = vmul.f32 %v1853, %v1965
        %v1982 = vmul.f32 %v1854, %v1966
        %v1983 = vmul.f32 %v1855, %v1967
        %v1984 = vmul.f32 %v1856, %v1968
        %v1985 = vmul.f32 %v1857, %v1969
        %v1986 = vmul.f32 %v1858, %v1970
        %v1987 = vmul.f32 %v1859, %v1971
        %v1988 = vpack.c.bf16 %v1974, %v1972
        %v1989 = vpack.c.bf16 %v1975, %v1973
        %v1990 = vpack.c.bf16 %v1978, %v1976
        %v1991 = vpack.c.bf16 %v1979, %v1977
        %v1992 = vpack.c.bf16 %v1982, %v1980
        %v1993 = vpack.c.bf16 %v1983, %v1981
        %v1994 = vpack.c.bf16 %v1986, %v1984
        %v1995 = vpack.c.bf16 %v1987, %v1985
        %v1996 = vld [vmem:[%s11] sm:$0xf]
        %v1997 = vld [vmem:[%s11 + $0x4] sm:$0xf]
        %v1998 = vld [vmem:[%s11 + $0x8] sm:$0xf]
        %v1999 = vld [vmem:[%s11 + $0xc] sm:$0xf]
        %v2000 = vld [vmem:[%s12] sm:$0xff]
        %v2001 = vld [vmem:[%s12 + $0x8] sm:$0xff]
        %v2002 = vld [vmem:[%s12 + $0x10] sm:$0xff]
        %v2003 = vld [vmem:[%s12 + $0x18] sm:$0xff]
        %2005 = vset.pattern.permute.xlu0 0
        %2006 = vperm.xlu0 %2005, %v2000
        %v2007 = vpop.permute.xlu0 %2006
        %2010 = vset.pattern.permute.xlu0 0
        %2011 = vperm.xlu0 %2010, %v2001
        %v2012 = vpop.permute.xlu0 %2011
        %2015 = vset.pattern.permute.xlu0 0
        %2016 = vperm.xlu0 %2015, %v2002
        %v2017 = vpop.permute.xlu0 %2016
        %2020 = vset.pattern.permute.xlu0 0
        %2021 = vperm.xlu0 %2020, %v2003
        %v2022 = vpop.permute.xlu0 %2021
        %v2028 = vunpack.c.l.b16 %v1996
        %v2029 = vunpack.c.l.b16 %v1997
        %v2030 = vunpack.c.l.b16 %v1998
        %v2031 = vunpack.c.l.b16 %v1999
        %v2032 = vpack.c.b16 %v2029, %v2028
        %v2033 = vpack.c.b16 %v2031, %v2030
        %vm2034 = vcmask 523264
        %v2036 = vsel %vm2034, %v2032, 0
        %v2039 = vsel %vm2034, %v2033, 0
        %2041 = vmatprep.subr.bf16.mxu0 %v1989
        %2042 = vmatpush1.bf16.msra.mxu0 %v1988
        %2043 = vmatprep.subr.bf16.mxu0 %v1991
        %2044 = vmatpush1.bf16.msra.mxu0 %v1990
        %2045 = vmatprep.subr.bf16.mxu0 %v1993
        %2046 = vmatpush1.bf16.msra.mxu0 %v1992
        %2047 = vmatprep.subr.bf16.mxu0 %v1995
        %2048 = vmatpush1.bf16.msra.mxu0 %v1994
        %2049 = vmatprep.subr.bf16.mxu0 0
        %2050 = vmatpush1.bf16.msra.mxu0 0
        %2051 = vmatprep.subr.bf16.mxu0 0
        %2052 = vmatpush1.bf16.msra.mxu0 0
        %2053 = vmatprep.subr.bf16.mxu0 0
        %2054 = vmatpush1.bf16.msra.mxu0 0
        %2055 = vmatprep.subr.bf16.mxu0 0
        %2056 = vmatpush1.bf16.msra.mxu0 0
        %2057 = vmatprep.subr.bf16.mxu0 0
        %2058 = vmatpush1.bf16.msra.mxu0 0
        %2059 = vmatprep.subr.bf16.mxu0 0
        %2060 = vmatpush1.bf16.msra.mxu0 0
        %2061 = vmatprep.subr.bf16.mxu0 0
        %2062 = vmatpush1.bf16.msra.mxu0 0
        %2063 = vmatprep.subr.bf16.mxu0 0
        %2064 = vmatpush1.bf16.msra.mxu0 0
        %2065 = vmatprep.subr.bf16.mxu0 0
        %2066 = vmatpush1.bf16.msra.mxu0 0
        %2067 = vmatprep.subr.bf16.mxu0 0
        %2068 = vmatpush1.bf16.msra.mxu0 0
        %2069 = vmatprep.subr.bf16.mxu0 0
        %2070 = vmatpush1.bf16.msra.mxu0 0
        %2071 = vmatprep.subr.bf16.mxu0 0
        %2072 = vmatpush1.bf16.msra.mxu0 0
        %2073 = vmatprep.mubr.bf16.mxu0 0
        %2074 = vmatmul.mubr.bf16.gmra.mrb[0].mxu0 %v2036
        %v2075 = vpop.f32.mrb[0].mxu0
        %v2076 = vadd.f32 %v2007, %v2075
        %v2077 = vpop.f32.mrb[0].mxu0
        %v2078 = vadd.f32 %v2007, %v2077
        %v2079 = vpop.f32.mrb[0].mxu0
        %v2080 = vadd.f32 %v2012, %v2079
        %v2081 = vpop.f32.mrb[0].mxu0
        %v2082 = vadd.f32 %v2012, %v2081
        %2083 = vmatprep.mubr.bf16.mxu0 0
        %2084 = vmatmul.mubr.bf16.gmra.mrb[0].mxu0 %v2039
        %v2085 = vpop.f32.mrb[0].mxu0
        %v2086 = vadd.f32 %v2017, %v2085
        %v2087 = vpop.f32.mrb[0].mxu0
        %v2088 = vadd.f32 %v2017, %v2087
        %v2089 = vpop.f32.mrb[0].mxu0
        %v2090 = vadd.f32 %v2022, %v2089
        %v2091 = vpop.f32.mrb[0].mxu0
        %v2092 = vadd.f32 %v2022, %v2091
        %2093 = vdwg.mxu0
        %v2094 = vadd.f32 %v1485, %v2076
        %v2095 = vadd.f32 %v1486, %v2078
        %v2096 = vadd.f32 %v1487, %v2080
        %v2097 = vadd.f32 %v1488, %v2082
        %v2098 = vadd.f32 %v1489, %v2086
        %v2099 = vadd.f32 %v1490, %v2088
        %v2100 = vadd.f32 %v1491, %v2090
        %v2101 = vadd.f32 %v1492, %v2092
        %2102 = vst [vmem:[%s473] sm:$0xff] %v2094
        %2103 = vst [vmem:[%s473 + $0x8] sm:$0xff] %v2095
        %2104 = vst [vmem:[%s473 + $0x10] sm:$0xff] %v2096
        %2105 = vst [vmem:[%s473 + $0x18] sm:$0xff] %v2097
        %2106 = vst [vmem:[%s473 + $0x20] sm:$0xff] %v2098
        %2107 = vst [vmem:[%s473 + $0x28] sm:$0xff] %v2099
        %2108 = vst [vmem:[%s473 + $0x30] sm:$0xff] %v2100
        %2109 = vst [vmem:[%s473 + $0x38] sm:$0xff] %v2101
        %s2110 = sand.u32 %s321, 1
        %s2111 = scalar_lea.sflag [#allocation4], %s2110
        %s2112 = sand.u32 %s321, 1
        %s2113 = smul.addr %s2112, 64
        %s2114 = scalar_lea.vmem [#allocation5], %s2113
        // Predicated region
        $region77: #{tpu_custom_call.1} parent=71 // pred_check
          %p2115 = pneg %p331
        $region78: #{tpu_custom_call.1} parent=71 // pred_check_branch
          %2117 = sbr.rel (%p2115) target = $region80
        $region79: #{tpu_custom_call.1} parent=71 // pred_region
          %s2119 = ssub.s32 1024, 1024
          %2120 = vsyncadd %s2111, %s2119
          %s2121 = smul.addr %s30, 8
          %s2122 = smul.addr %s2121, 128
          %s2123 = scalar_lea.hbm %s13, %s2122
          %s2124 = sshll.u32 %s2114, 4
          %s2125 = int_to_ptr.vmem [resolvable:$true] %s2124
          %2130 = dma.vmem_to_hbm [thread:$0]  %s2125, 1024, %s2123, %s2111, 256, 256, 16
        $region80: #{tpu_custom_call.1} parent=71 // pred_fallthru
          _
      $region72: #{tpu_custom_call.1} parent=5 // pred_fallthru
        _
      %p2131 = scmp.le.s32.totalorder 2, %s25
      // Predicated region
      $region81: #{tpu_custom_call.1} parent=5 // pred_check
        %p2132 = pneg %p2131
      $region82: #{tpu_custom_call.1} parent=5 // pred_check_branch
        %2134 = sbr.rel (%p2132) target = $region84
      $region83: #{tpu_custom_call.1} parent=5 // pred_region
        %s2135 = ssub.s32 %s25, 2
        // Predicated region
        $region85: #{tpu_custom_call.1} parent=83 // pred_check
          %p2136 = pneg %p337
        $region86: #{tpu_custom_call.1} parent=83 // pred_check_branch
          %2138 = sbr.rel (%p2136) target = $region88
        $region87: #{tpu_custom_call.1} parent=83 // pred_region
          %s2139 = sand.u32 %s322, 1
          %s2140 = scalar_lea.sflag [#allocation4], %s2139
          %s2141 = sand.u32 %s322, 1
          %s2142 = smul.addr %s2141, 64
          %s2143 = scalar_lea.vmem [#allocation5], %s2142
          %2144 = dma.done %s2140, 1024
        $region88: #{tpu_custom_call.1} parent=83 // pred_fallthru
          _
      $region84: #{tpu_custom_call.1} parent=5 // pred_fallthru
        _
    $region6: #{tpu_custom_call.1} parent=1 // loop_footer
      %s29 = sadd.s32 1, %s25
    $region7: #{tpu_custom_call.1} parent=1 // loop_footer_branch
      %24 = sbr.rel target = $region3
    $region8: #{tpu_custom_call.1} parent=1 // loop_exit
      _
    %2145 = vsyncpa [#allocation3], 1
    %s2146 = scalar_lea.sflag [#allocation3], 1
    %2147 = vsyncpa %s2146, 1
    %2148 = vsyncpa [#allocation4], 1
    %s2149 = scalar_lea.sflag [#allocation4], 1
    %2150 = vsyncpa %s2149, 1

</llo_original>
